<compile_context>
chip_gen: v7x
topology: tpu7x:2x2x1
jax: 0.10.0
libtpu: 0.0.40
codegen_flags: <defaults>
</compile_context>

<pallas_src>
import jax
import jax.numpy as jnp
import numpy as np
from jax.experimental import pallas as pl
from jax.experimental.pallas import tpu as pltpu


_SQRT_2_OVER_PI = 0.7978845608028654


def _gelu_tanh(x):
    # GELU(approximate='tanh'), matching nn.GELU(approximate='tanh')
    return 0.5 * x * (1.0 + jnp.tanh(_SQRT_2_OVER_PI * (x + 0.044715 * x * x * x)))


def _make_drop_kernel(precision):
    """Kernel variant that applies the classifier-free-guidance token drop."""

    def kernel(drop_ref,            # VMEM (Bb, 1, 1) compute dtype: 1.0 => drop row
               cap_ref,             # VMEM (Bb, T, C) caption dtype
               yemb_ref,            # VMEM (T, C) compute dtype
               w1_ref, b1_ref,      # VMEM (C, H) compute dtype, (1, H) f32
               w2_ref, b2_ref,      # VMEM (H, H) compute dtype, (1, H) f32
               out_ref):            # VMEM (Bb, T, H)
        Bb, T, C = cap_ref.shape
        H = out_ref.shape[-1]
        cdt = w1_ref.dtype

        # token_drop: per-row select of the learned null embedding, done in
        # compute dtype (select-then-matmul == cast-after-select here).
        dropped = drop_ref[...] > 0.5                                   # (Bb,1,1) bool
        x = jnp.where(dropped, yemb_ref[...][None], cap_ref[...].astype(cdt))

        # Fold batch rows into the matmul M dimension to fill the MXU.
        x2 = x.reshape(Bb * T, C)

        # Mlp: fc1 -> GELU(tanh) -> fc2 (module has drop=0, so no dropout).
        # compute-dtype MXU inputs, f32 accumulation, f32 bias/activation.
        h = jnp.dot(x2, w1_ref[...], preferred_element_type=jnp.float32,
                    precision=precision) + b1_ref[...]
        h = _gelu_tanh(h)
        o = jnp.dot(h.astype(cdt), w2_ref[...], preferred_element_type=jnp.float32,
                    precision=precision) + b2_ref[...]

        out_ref[...] = o.reshape(Bb, T, H).astype(out_ref.dtype)

    return kernel


def _make_nodrop_kernel(precision):
    """Fast path: no row can be dropped -> no mask, no y_embedding, no select."""

    def kernel(cap_ref, w1_ref, b1_ref, w2_ref, b2_ref, out_ref):
        Bb, T, C = cap_ref.shape
        H = out_ref.shape[-1]
        cdt = w1_ref.dtype

        x2 = cap_ref[...].astype(cdt).reshape(Bb * T, C)
        h = jnp.dot(x2, w1_ref[...], preferred_element_type=jnp.float32,
                    precision=precision) + b1_ref[...]
        h = _gelu_tanh(h)
        o = jnp.dot(h.astype(cdt), w2_ref[...], preferred_element_type=jnp.float32,
                    precision=precision) + b2_ref[...]
        out_ref[...] = o.reshape(Bb, T, H).astype(out_ref.dtype)

    return kernel


def _choose_batch_block(B, T, target_rows, min_rows=256):
    """Pick Bb (rows per block) and padded batch B_pad.

    Prefers an exact divisor of B so no padding is needed; if no divisor gives
    at least `min_rows` MXU M rows (e.g. B prime), pads B up to a multiple of a
    good Bb instead of silently degrading to Bb=1.
    """
    want = max(1, -(-target_rows // T))        # ceil(target_rows / T)
    if B <= want:
        return B, B                             # single block covering all rows
    bb = want
    best = bb
    while B % best != 0:
        best -= 1
    if best * T >= min_rows:
        return best, B                          # good divisor, no padding
    B_pad = -(-B // bb) * bb                    # pad to multiple of bb
    return bb, B_pad


def _device_vmem_bytes():
    try:
        info = pltpu.get_tpu_info()
        cap = getattr(info, "vmem_capacity_bytes", None)
        if cap:
            return int(cap)
    except Exception:
        pass
    return 64 << 20    # conservative: v7x per-TensorCore VMEM


def caption_embedder_forward(caption, y_embedding, w1, b1, w2, b2, *,
                             train, uncond_prob, force_drop_ids=None,
                             rng_key=None,
                             compute_dtype=jnp.bfloat16,
                             out_dtype=None,
                             target_mxu_rows=384,   # Bb=4 at T=120; 128+ saturates v5e
                             weight_buffer_count=1):
    """Pallas implementation of CaptionEmbedder.forward.

    caption: (B, T, C) (or PixArt-style (B, 1, T, C)) -> returns (B, T, H).
    Caption may already be bf16 (recommended on v6e: halves the dominant
    per-step DMA); no wrapper cast is performed.
    compute_dtype: dtype fed to the MXU (accumulation is always f32);
                   jnp.float32 gives an exact f32 path (HIGHEST-precision dots).
    out_dtype: output dtype (default = compute_dtype, i.e. bf16 on the
               performance path — halves output HBM writeback).
    weight_buffer_count: 1 (default) single-buffers the grid-invariant operands
               (pl.Buffered(1)) since they are DMA'd exactly once; 2 restores
               default Pallas double-buffering.
    """
    # PixArt passes caption as (B, 1, T, C); squeeze the singleton dim.
    if caption.ndim == 4:
        assert caption.shape[1] == 1, f"unexpected caption shape {caption.shape}"
        caption = caption[:, 0]
    B, T, C = caption.shape
    H = w1.shape[1]
    out_dtype = compute_dtype if out_dtype is None else out_dtype

    if train:
        assert caption.shape[1:] == y_embedding.shape, (
            f"{caption.shape} is not {y_embedding.shape}")

    # Classifier-free-guidance drop ids (torch.rand < uncond_prob or forced).
    use_dropout = uncond_prob > 0
    has_drop = (train and use_dropout) or (force_drop_ids is not None)

    # f32 "exact" path must not silently run through reduced-precision passes.
    exact_f32 = np.dtype(compute_dtype) == np.dtype(np.float32)
    precision = jax.lax.Precision.HIGHEST if exact_f32 else None

    # Weights in compute dtype (bf16 default: halves weight DMA bytes and runs
    # the MXU at bf16 rate); biases stay f32 (added onto the f32 accumulator).
    w1c = w1.astype(compute_dtype)
    w2c = w2.astype(compute_dtype)
    b1c = b1.astype(jnp.float32)
    b2c = b2.astype(jnp.float32)

    Bb, B_pad = _choose_batch_block(B, T, target_mxu_rows)
    num_blocks = B_pad // Bb

    caption_p = caption
    drop_mask = None
    yemb_c = None
    if has_drop:
        if force_drop_ids is None:
            assert rng_key is not None, "rng_key required for random token drop"
            drop_ids = jax.random.uniform(rng_key, (B,)) < uncond_prob
        else:
            drop_ids = force_drop_ids == 1
        drop_mask = drop_ids.astype(compute_dtype).reshape(B, 1, 1)
        yemb_c = y_embedding.astype(compute_dtype)

    if B_pad != B:
        pad = B_pad - B
        caption_p = jnp.pad(caption_p, ((0, pad), (0, 0), (0, 0)))
        if has_drop:
            drop_mask = jnp.pad(drop_mask, ((0, pad), (0, 0), (0, 0)))

    # ---- VMEM budget / cost estimate -------------------------------------
    cdt_size = np.dtype(compute_dtype).itemsize
    out_size = np.dtype(out_dtype).itemsize
    cap_size = caption.dtype.itemsize

    per_step = Bb * T * C * cap_size + Bb * T * H * out_size
    if has_drop:
        per_step += 8 * 128 * cdt_size            # (Bb,1,1) mask pads to a vreg tile

    invariants = (C * H + H * H) * cdt_size + 2 * H * 4
    if has_drop:
        invariants += T * C * cdt_size            # y_embedding

    inv_buf = 1 if weight_buffer_count == 1 else 2
    intermediates = (Bb * T * C * cdt_size        # x / x2 in compute dtype
                     + Bb * T * H * (4 + cdt_size + 4))   # h f32, h cast, o f32

    vmem_bytes = 2 * per_step + inv_buf * invariants + intermediates + (4 << 20)
    vmem_cap = _device_vmem_bytes() - (4 << 20)   # leave compiler-scratch headroom
    vmem_bytes = int(min(max(vmem_bytes, 16 << 20), vmem_cap))

    bytes_accessed = (B_pad * T * C * cap_size
                      + (C * H + H * H) * cdt_size + 2 * H * 4
                      + B_pad * T * H * out_size)
    if has_drop:
        bytes_accessed += T * C * cdt_size + B_pad * cdt_size
    cost = pl.CostEstimate(
        flops=int(2 * B_pad * T * C * H + 2 * B_pad * T * H * H),
        transcendentals=int(B_pad * T * H),       # tanh inside the GELU
        bytes_accessed=int(bytes_accessed),
    )

    # ---- BlockSpecs --------------------------------------------------------
    def _build_call(buffer_count):
        if buffer_count == 1:
            def _const_spec(shape):
                return pl.BlockSpec(shape, lambda *_: (0,) * len(shape),
                                    pipeline_mode=pl.Buffered(1))
        else:
            def _const_spec(shape):
                return pl.BlockSpec(shape, lambda *_: (0,) * len(shape))

        cap_spec = pl.BlockSpec((Bb, T, C), lambda g: (g, 0, 0))
        out_spec = pl.BlockSpec((Bb, T, H), lambda g: (g, 0, 0))
        w_specs = [_const_spec((C, H)), _const_spec((1, H)),
                   _const_spec((H, H)), _const_spec((1, H))]

        if has_drop:
            kernel = _make_drop_kernel(precision)
            in_specs = ([pl.BlockSpec((Bb, 1, 1), lambda g: (g, 0, 0)),
                         cap_spec, _const_spec((T, C))] + w_specs)
            operands = (drop_mask, caption_p, yemb_c, w1c, b1c, w2c, b2c)
        else:
            kernel = _make_nodrop_kernel(precision)
            in_specs = [cap_spec] + w_specs
            operands = (caption_p, w1c, b1c, w2c, b2c)

        grid_spec = pltpu.PrefetchScalarGridSpec(
            num_scalar_prefetch=0,
            grid=(num_blocks,),
            in_specs=in_specs,
            out_specs=out_spec,
        )
        return pl.pallas_call(
            kernel,
            out_shape=jax.ShapeDtypeStruct((B_pad, T, H), out_dtype),
            grid_spec=grid_spec,
            compiler_params=pltpu.CompilerParams(
                dimension_semantics=("parallel",),
                vmem_limit_bytes=vmem_bytes),
            cost_estimate=cost,
        )(*operands)

    if weight_buffer_count == 1:
        try:
            out = _build_call(1)
        except Exception:
            # Guarded fallback: some JAX builds may reject Buffered(1); the
            # double-buffered variant is functionally identical.
            out = _build_call(2)
    else:
        out = _build_call(weight_buffer_count)

    if B_pad != B:
        out = out[:B]
    return out


def _reference_forward(caption, y_embedding, w1, b1, w2, b2, drop_ids):
    # True-f32 reference (HIGHEST precision dots == torch f32 math).
    x = jnp.where(drop_ids[:, None, None], y_embedding[None], caption)
    h = _gelu_tanh(jnp.dot(x, w1, precision=jax.lax.Precision.HIGHEST) + b1)
    return jnp.dot(h, w2, precision=jax.lax.Precision.HIGHEST) + b2


if __name__ == "__main__":
    # Small shapes consistent with the module (token_num=T, in_channels=C, hidden=H).
    B, T, C, H = 2, 8, 32, 32
    uncond_prob = 0.1

    key = jax.random.PRNGKey(0)
    k_cap, k_yemb, k_w1, k_b1, k_w2, k_b2 = jax.random.split(key, 6)

    caption = jax.random.normal(k_cap, (B, T, C), jnp.float32)

    # y_embedding = randn(token_num, in_channels) / sqrt(in_channels)
    y_embedding = jax.random.normal(k_yemb, (T, C), jnp.float32) / (C ** 0.5)
    # Mlp(fc1: C->H, fc2: H->H); weights stored already transposed (in, out).
    w1 = jax.random.normal(k_w1, (C, H), jnp.float32) * (1.0 / np.sqrt(C))
    b1 = jax.random.normal(k_b1, (1, H), jnp.float32) * 0.01
    w2 = jax.random.normal(k_w2, (H, H), jnp.float32) * (1.0 / np.sqrt(H))
    b2 = jax.random.normal(k_b2, (1, H), jnp.float32) * 0.01

    # Deterministic CFG drop: drop batch 0, keep batch 1.
    force_drop_ids = jnp.array([1, 0], jnp.int32)
    ref_drop = _reference_forward(caption, y_embedding, w1, b1, w2, b2,
                                  force_drop_ids == 1)
    ref_nodrop = _reference_forward(caption, y_embedding, w1, b1, w2, b2,
                                    jnp.zeros((B,), bool))

    # Exact f32 path — HIGHEST-precision dots, matches the f32 reference tightly.
    out_f32 = caption_embedder_forward(
        caption, y_embedding, w1, b1, w2, b2,
        train=True, uncond_prob=uncond_prob, force_drop_ids=force_drop_ids,
        compute_dtype=jnp.float32, out_dtype=jnp.float32)
    out_f32 = jax.block_until_ready(out_f32)
    np.testing.assert_allclose(np.asarray(out_f32), np.asarray(ref_drop),
                               rtol=1e-5, atol=1e-5)
    assert out_f32.shape == (B, T, H) and out_f32.dtype == jnp.float32

    # Default performance path — bf16 MXU inputs, bf16 output, f32 accumulation.
    out_bf16 = caption_embedder_forward(
        caption, y_embedding, w1, b1, w2, b2,
        train=True, uncond_prob=uncond_prob, force_drop_ids=force_drop_ids)
    out_bf16 = jax.block_until_ready(out_bf16)
    assert out_bf16.shape == (B, T, H) and out_bf16.dtype == jnp.bfloat16
    np.testing.assert_allclose(np.asarray(out_bf16.astype(jnp.float32)),
                               np.asarray(ref_drop), rtol=5e-2, atol=5e-2)

    # No-drop fast path (inference without CFG drop): no mask / y_embedding DMAs.
    out_nd = caption_embedder_forward(
        caption, y_embedding, w1, b1, w2, b2,
        train=False, uncond_prob=0.0)
    out_nd = jax.block_until_ready(out_nd)
    assert out_nd.shape == (B, T, H) and out_nd.dtype == jnp.bfloat16
    np.testing.assert_allclose(np.asarray(out_nd.astype(jnp.float32)),
                               np.asarray(ref_nodrop), rtol=5e-2, atol=5e-2)

    print("KERNEL_OK")
</pallas_src>

<mosaic_0001>
module attributes {stable_mosaic.version = 11 : i64} {
  func.func @kernel(%arg0: i32, %arg1: memref<2x1x1xf32, #tpu.memory_space<vmem>>, %arg2: memref<2x8x32xf32, #tpu.memory_space<vmem>>, %arg3: memref<8x32xf32, #tpu.memory_space<vmem>>, %arg4: memref<32x32xf32, #tpu.memory_space<vmem>>, %arg5: memref<1x32xf32, #tpu.memory_space<vmem>>, %arg6: memref<32x32xf32, #tpu.memory_space<vmem>>, %arg7: memref<1x32xf32, #tpu.memory_space<vmem>>, %arg8: memref<2x8x32xf32, #tpu.memory_space<vmem>>) attributes {dimension_semantics = [#tpu.dimension_semantics<parallel>], iteration_bounds = array<i64: 1>, scalar_prefetch = 0 : i64, scratch_operands = 0 : i64, tpu.core_type = #tpu.core_type<tc>, window_params = [{transform_indices = @transform_0, window_bounds = array<i64: 2, 1, 1>}, {transform_indices = @transform_1, window_bounds = array<i64: 2, 8, 32>}, {pipeline_mode = #tpu.pipeline_mode<synchronous>, transform_indices = @transform_2, window_bounds = array<i64: 8, 32>}, {pipeline_mode = #tpu.pipeline_mode<synchronous>, transform_indices = @transform_3, window_bounds = array<i64: 32, 32>}, {pipeline_mode = #tpu.pipeline_mode<synchronous>, transform_indices = @transform_4, window_bounds = array<i64: 1, 32>}, {pipeline_mode = #tpu.pipeline_mode<synchronous>, transform_indices = @transform_5, window_bounds = array<i64: 32, 32>}, {pipeline_mode = #tpu.pipeline_mode<synchronous>, transform_indices = @transform_6, window_bounds = array<i64: 1, 32>}, {transform_indices = @transform_7, window_bounds = array<i64: 2, 8, 32>}]} {
    %c0 = arith.constant 0 : index
    %c0_0 = arith.constant 0 : index
    %c0_1 = arith.constant 0 : index
    %0 = vector.load %arg1[%c0, %c0_0, %c0_1] : memref<2x1x1xf32, #tpu.memory_space<vmem>>, vector<2x1x1xf32>
    %cst = arith.constant 5.000000e-01 : f32
    %1 = vector.broadcast %cst : f32 to vector<2x1x1xf32>
    %2 = arith.cmpf ogt, %0, %1 : vector<2x1x1xf32>
    %c0_2 = arith.constant 0 : index
    %c0_3 = arith.constant 0 : index
    %3 = vector.load %arg3[%c0_2, %c0_3] : memref<8x32xf32, #tpu.memory_space<vmem>>, vector<8x32xf32>
    %4 = vector.shape_cast %3 : vector<8x32xf32> to vector<1x8x32xf32>
    %c0_4 = arith.constant 0 : index
    %c0_5 = arith.constant 0 : index
    %c0_6 = arith.constant 0 : index
    %5 = vector.load %arg2[%c0_4, %c0_5, %c0_6] : memref<2x8x32xf32, #tpu.memory_space<vmem>>, vector<2x8x32xf32>
    %6 = vector.shape_cast %2 : vector<2x1x1xi1> to vector<2x1x1xi1>
    %7 = vector.broadcast %6 : vector<2x1x1xi1> to vector<2x8x32xi1>
    %8 = vector.shape_cast %4 : vector<1x8x32xf32> to vector<1x8x32xf32>
    %9 = vector.broadcast %8 : vector<1x8x32xf32> to vector<2x8x32xf32>
    %10 = arith.select %7, %9, %5 : vector<2x8x32xi1>, vector<2x8x32xf32>
    %11 = vector.shape_cast %10 : vector<2x8x32xf32> to vector<16x32xf32>
    %c0_7 = arith.constant 0 : index
    %c0_8 = arith.constant 0 : index
    %12 = vector.load %arg4[%c0_7, %c0_8] : memref<32x32xf32, #tpu.memory_space<vmem>>, vector<32x32xf32>
    %cst_9 = arith.constant dense<0.000000e+00> : vector<16x32xf32>
    %13 = tpu.matmul %11, %12, %cst_9 {dimension_numbers = #tpu.dot_dimension_numbers<[1], [0], [0], [1], [0, 0, 1, 1], [], []>, precision = #tpu.contract_precision<fp32>} : vector<16x32xf32>, vector<32x32xf32>, vector<16x32xf32> -> vector<16x32xf32>
    %c0_10 = arith.constant 0 : index
    %c0_11 = arith.constant 0 : index
    %14 = vector.load %arg5[%c0_10, %c0_11] : memref<1x32xf32, #tpu.memory_space<vmem>>, vector<1x32xf32>
    %15 = vector.broadcast %14 : vector<1x32xf32> to vector<16x32xf32>
    %16 = arith.addf %13, %15 : vector<16x32xf32>
    %cst_12 = arith.constant 5.000000e-01 : f32
    %17 = vector.broadcast %cst_12 : f32 to vector<16x32xf32>
    %18 = arith.mulf %17, %16 : vector<16x32xf32>
    %cst_13 = arith.constant 4.471500e-02 : f32
    %19 = vector.broadcast %cst_13 : f32 to vector<16x32xf32>
    %20 = arith.mulf %19, %16 : vector<16x32xf32>
    %21 = arith.mulf %20, %16 : vector<16x32xf32>
    %22 = arith.mulf %21, %16 : vector<16x32xf32>
    %23 = arith.addf %16, %22 : vector<16x32xf32>
    %cst_14 = arith.constant 0.797884583 : f32
    %24 = vector.broadcast %cst_14 : f32 to vector<16x32xf32>
    %25 = arith.mulf %24, %23 : vector<16x32xf32>
    %26 = math.tanh %25 : vector<16x32xf32>
    %cst_15 = arith.constant 1.000000e+00 : f32
    %27 = vector.broadcast %cst_15 : f32 to vector<16x32xf32>
    %28 = arith.addf %27, %26 : vector<16x32xf32>
    %29 = arith.mulf %18, %28 : vector<16x32xf32>
    %c0_16 = arith.constant 0 : index
    %c0_17 = arith.constant 0 : index
    %30 = vector.load %arg6[%c0_16, %c0_17] : memref<32x32xf32, #tpu.memory_space<vmem>>, vector<32x32xf32>
    %cst_18 = arith.constant dense<0.000000e+00> : vector<16x32xf32>
    %31 = tpu.matmul %29, %30, %cst_18 {dimension_numbers = #tpu.dot_dimension_numbers<[1], [0], [0], [1], [0, 0, 1, 1], [], []>, precision = #tpu.contract_precision<fp32>} : vector<16x32xf32>, vector<32x32xf32>, vector<16x32xf32> -> vector<16x32xf32>
    %c0_19 = arith.constant 0 : index
    %c0_20 = arith.constant 0 : index
    %32 = vector.load %arg7[%c0_19, %c0_20] : memref<1x32xf32, #tpu.memory_space<vmem>>, vector<1x32xf32>
    %33 = vector.broadcast %32 : vector<1x32xf32> to vector<16x32xf32>
    %34 = arith.addf %31, %33 : vector<16x32xf32>
    %35 = vector.shape_cast %34 : vector<16x32xf32> to vector<2x8x32xf32>
    %c0_21 = arith.constant 0 : index
    %c0_22 = arith.constant 0 : index
    %c0_23 = arith.constant 0 : index
    %36 = vector.load %arg8[%c0_21, %c0_22, %c0_23] : memref<2x8x32xf32, #tpu.memory_space<vmem>>, vector<2x8x32xf32>
    tpu.vector_store %arg8[%c0_21, %c0_22, %c0_23], %35 {strides = array<i32>} : memref<2x8x32xf32, #tpu.memory_space<vmem>>, vector<2x8x32xf32>,
    return
  }
  func.func @transform_0(%arg0: i32) -> (i32, i32, i32) {
    %c0_i32 = arith.constant 0 : i32
    %c0_i32_0 = arith.constant 0 : i32
    %c0_i32_1 = arith.constant 0 : i32
    return %arg0, %c0_i32, %c0_i32_0 : i32, i32, i32
  }
  func.func @transform_1(%arg0: i32) -> (i32, i32, i32) {
    %c0_i32 = arith.constant 0 : i32
    %c0_i32_0 = arith.constant 0 : i32
    %c0_i32_1 = arith.constant 0 : i32
    return %arg0, %c0_i32, %c0_i32_0 : i32, i32, i32
  }
  func.func @transform_2(%arg0: i32) -> (i32, i32) {
    %c0_i32 = arith.constant 0 : i32
    %c0_i32_0 = arith.constant 0 : i32
    %c0_i32_1 = arith.constant 0 : i32
    return %c0_i32, %c0_i32_0 : i32, i32
  }
  func.func @transform_3(%arg0: i32) -> (i32, i32) {
    %c0_i32 = arith.constant 0 : i32
    %c0_i32_0 = arith.constant 0 : i32
    %c0_i32_1 = arith.constant 0 : i32
    return %c0_i32, %c0_i32_0 : i32, i32
  }
  func.func @transform_4(%arg0: i32) -> (i32, i32) {
    %c0_i32 = arith.constant 0 : i32
    %c0_i32_0 = arith.constant 0 : i32
    %c0_i32_1 = arith.constant 0 : i32
    return %c0_i32, %c0_i32_0 : i32, i32
  }
  func.func @transform_5(%arg0: i32) -> (i32, i32) {
    %c0_i32 = arith.constant 0 : i32
    %c0_i32_0 = arith.constant 0 : i32
    %c0_i32_1 = arith.constant 0 : i32
    return %c0_i32, %c0_i32_0 : i32, i32
  }
  func.func @transform_6(%arg0: i32) -> (i32, i32) {
    %c0_i32 = arith.constant 0 : i32
    %c0_i32_0 = arith.constant 0 : i32
    %c0_i32_1 = arith.constant 0 : i32
    return %c0_i32, %c0_i32_0 : i32, i32
  }
  func.func @transform_7(%arg0: i32) -> (i32, i32, i32) {
    %c0_i32 = arith.constant 0 : i32
    %c0_i32_0 = arith.constant 0 : i32
    %c0_i32_1 = arith.constant 0 : i32
    return %arg0, %c0_i32, %c0_i32_0 : i32, i32, i32
  }
}

module attributes {stable_mosaic.version = 11 : i64} {
  func.func @kernel(%arg0: i32, %arg1: memref<2x1x1xf32, #tpu.memory_space<vmem>>, %arg2: memref<2x8x32xf32, #tpu.memory_space<vmem>>, %arg3: memref<8x32xf32, #tpu.memory_space<vmem>>, %arg4: memref<32x32xf32, #tpu.memory_space<vmem>>, %arg5: memref<1x32xf32, #tpu.memory_space<vmem>>, %arg6: memref<32x32xf32, #tpu.memory_space<vmem>>, %arg7: memref<1x32xf32, #tpu.memory_space<vmem>>, %arg8: memref<2x8x32xf32, #tpu.memory_space<vmem>>) attributes {dimension_semantics = [#tpu.dimension_semantics<parallel>], iteration_bounds = array<i64: 1>, scalar_prefetch = 0 : i64, scratch_operands = 0 : i64, tpu.core_type = #tpu.core_type<tc>, window_params = [{transform_indices = @transform_0, window_bounds = array<i64: 2, 1, 1>}, {transform_indices = @transform_1, window_bounds = array<i64: 2, 8, 32>}, {pipeline_mode = #tpu.pipeline_mode<synchronous>, transform_indices = @transform_2, window_bounds = array<i64: 8, 32>}, {pipeline_mode = #tpu.pipeline_mode<synchronous>, transform_indices = @transform_3, window_bounds = array<i64: 32, 32>}, {pipeline_mode = #tpu.pipeline_mode<synchronous>, transform_indices = @transform_4, window_bounds = array<i64: 1, 32>}, {pipeline_mode = #tpu.pipeline_mode<synchronous>, transform_indices = @transform_5, window_bounds = array<i64: 32, 32>}, {pipeline_mode = #tpu.pipeline_mode<synchronous>, transform_indices = @transform_6, window_bounds = array<i64: 1, 32>}, {transform_indices = @transform_7, window_bounds = array<i64: 2, 8, 32>}]} {
    %c0 = arith.constant 0 : index
    %c0_0 = arith.constant 0 : index
    %c0_1 = arith.constant 0 : index
    %0 = vector.load %arg1[%c0, %c0_0, %c0_1] : memref<2x1x1xf32, #tpu.memory_space<vmem>>, vector<2x1x1xf32>
    %cst = arith.constant 5.000000e-01 : f32
    %1 = vector.broadcast %cst : f32 to vector<2x1x1xf32>
    %2 = arith.cmpf ogt, %0, %1 : vector<2x1x1xf32>
    %c0_2 = arith.constant 0 : index
    %c0_3 = arith.constant 0 : index
    %3 = vector.load %arg3[%c0_2, %c0_3] : memref<8x32xf32, #tpu.memory_space<vmem>>, vector<8x32xf32>
    %4 = vector.shape_cast %3 : vector<8x32xf32> to vector<1x8x32xf32>
    %c0_4 = arith.constant 0 : index
    %c0_5 = arith.constant 0 : index
    %c0_6 = arith.constant 0 : index
    %5 = vector.load %arg2[%c0_4, %c0_5, %c0_6] : memref<2x8x32xf32, #tpu.memory_space<vmem>>, vector<2x8x32xf32>
    %6 = vector.shape_cast %2 : vector<2x1x1xi1> to vector<2x1x1xi1>
    %7 = vector.broadcast %6 : vector<2x1x1xi1> to vector<2x8x32xi1>
    %8 = vector.shape_cast %4 : vector<1x8x32xf32> to vector<1x8x32xf32>
    %9 = vector.broadcast %8 : vector<1x8x32xf32> to vector<2x8x32xf32>
    %10 = arith.select %7, %9, %5 : vector<2x8x32xi1>, vector<2x8x32xf32>
    %11 = vector.shape_cast %10 : vector<2x8x32xf32> to vector<16x32xf32>
    %c0_7 = arith.constant 0 : index
    %c0_8 = arith.constant 0 : index
    %12 = vector.load %arg4[%c0_7, %c0_8] : memref<32x32xf32, #tpu.memory_space<vmem>>, vector<32x32xf32>
    %cst_9 = arith.constant dense<0.000000e+00> : vector<16x32xf32>
    %13 = tpu.matmul %11, %12, %cst_9 {dimension_numbers = #tpu.dot_dimension_numbers<[1], [0], [0], [1], [0, 0, 1, 1], [], []>, precision = #tpu.contract_precision<fp32>} : vector<16x32xf32>, vector<32x32xf32>, vector<16x32xf32> -> vector<16x32xf32>
    %c0_10 = arith.constant 0 : index
    %c0_11 = arith.constant 0 : index
    %14 = vector.load %arg5[%c0_10, %c0_11] : memref<1x32xf32, #tpu.memory_space<vmem>>, vector<1x32xf32>
    %15 = vector.broadcast %14 : vector<1x32xf32> to vector<16x32xf32>
    %16 = arith.addf %13, %15 : vector<16x32xf32>
    %cst_12 = arith.constant 5.000000e-01 : f32
    %17 = vector.broadcast %cst_12 : f32 to vector<16x32xf32>
    %18 = arith.mulf %17, %16 : vector<16x32xf32>
    %cst_13 = arith.constant 4.471500e-02 : f32
    %19 = vector.broadcast %cst_13 : f32 to vector<16x32xf32>
    %20 = arith.mulf %19, %16 : vector<16x32xf32>
    %21 = arith.mulf %20, %16 : vector<16x32xf32>
    %22 = arith.mulf %21, %16 : vector<16x32xf32>
    %23 = arith.addf %16, %22 : vector<16x32xf32>
    %cst_14 = arith.constant 0.797884583 : f32
    %24 = vector.broadcast %cst_14 : f32 to vector<16x32xf32>
    %25 = arith.mulf %24, %23 : vector<16x32xf32>
    %26 = math.tanh %25 : vector<16x32xf32>
    %cst_15 = arith.constant 1.000000e+00 : f32
    %27 = vector.broadcast %cst_15 : f32 to vector<16x32xf32>
    %28 = arith.addf %27, %26 : vector<16x32xf32>
    %29 = arith.mulf %18, %28 : vector<16x32xf32>
    %c0_16 = arith.constant 0 : index
    %c0_17 = arith.constant 0 : index
    %30 = vector.load %arg6[%c0_16, %c0_17] : memref<32x32xf32, #tpu.memory_space<vmem>>, vector<32x32xf32>
    %cst_18 = arith.constant dense<0.000000e+00> : vector<16x32xf32>
    %31 = tpu.matmul %29, %30, %cst_18 {dimension_numbers = #tpu.dot_dimension_numbers<[1], [0], [0], [1], [0, 0, 1, 1], [], []>, precision = #tpu.contract_precision<fp32>} : vector<16x32xf32>, vector<32x32xf32>, vector<16x32xf32> -> vector<16x32xf32>
    %c0_19 = arith.constant 0 : index
    %c0_20 = arith.constant 0 : index
    %32 = vector.load %arg7[%c0_19, %c0_20] : memref<1x32xf32, #tpu.memory_space<vmem>>, vector<1x32xf32>
    %33 = vector.broadcast %32 : vector<1x32xf32> to vector<16x32xf32>
    %34 = arith.addf %31, %33 : vector<16x32xf32>
    %35 = vector.shape_cast %34 : vector<16x32xf32> to vector<2x8x32xf32>
    %c0_21 = arith.constant 0 : index
    %c0_22 = arith.constant 0 : index
    %c0_23 = arith.constant 0 : index
    %36 = vector.load %arg8[%c0_21, %c0_22, %c0_23] : memref<2x8x32xf32, #tpu.memory_space<vmem>>, vector<2x8x32xf32>
    tpu.vector_store %arg8[%c0_21, %c0_22, %c0_23], %35 {strides = array<i32>} : memref<2x8x32xf32, #tpu.memory_space<vmem>>, vector<2x8x32xf32>,
    return
  }
  func.func @transform_0(%arg0: i32) -> (i32, i32, i32) {
    %c0_i32 = arith.constant 0 : i32
    %c0_i32_0 = arith.constant 0 : i32
    %c0_i32_1 = arith.constant 0 : i32
    return %arg0, %c0_i32, %c0_i32_0 : i32, i32, i32
  }
  func.func @transform_1(%arg0: i32) -> (i32, i32, i32) {
    %c0_i32 = arith.constant 0 : i32
    %c0_i32_0 = arith.constant 0 : i32
    %c0_i32_1 = arith.constant 0 : i32
    return %arg0, %c0_i32, %c0_i32_0 : i32, i32, i32
  }
  func.func @transform_2(%arg0: i32) -> (i32, i32) {
    %c0_i32 = arith.constant 0 : i32
    %c0_i32_0 = arith.constant 0 : i32
    %c0_i32_1 = arith.constant 0 : i32
    return %c0_i32, %c0_i32_0 : i32, i32
  }
  func.func @transform_3(%arg0: i32) -> (i32, i32) {
    %c0_i32 = arith.constant 0 : i32
    %c0_i32_0 = arith.constant 0 : i32
    %c0_i32_1 = arith.constant 0 : i32
    return %c0_i32, %c0_i32_0 : i32, i32
  }
  func.func @transform_4(%arg0: i32) -> (i32, i32) {
    %c0_i32 = arith.constant 0 : i32
    %c0_i32_0 = arith.constant 0 : i32
    %c0_i32_1 = arith.constant 0 : i32
    return %c0_i32, %c0_i32_0 : i32, i32
  }
  func.func @transform_5(%arg0: i32) -> (i32, i32) {
    %c0_i32 = arith.constant 0 : i32
    %c0_i32_0 = arith.constant 0 : i32
    %c0_i32_1 = arith.constant 0 : i32
    return %c0_i32, %c0_i32_0 : i32, i32
  }
  func.func @transform_6(%arg0: i32) -> (i32, i32) {
    %c0_i32 = arith.constant 0 : i32
    %c0_i32_0 = arith.constant 0 : i32
    %c0_i32_1 = arith.constant 0 : i32
    return %c0_i32, %c0_i32_0 : i32, i32
  }
  func.func @transform_7(%arg0: i32) -> (i32, i32, i32) {
    %c0_i32 = arith.constant 0 : i32
    %c0_i32_0 = arith.constant 0 : i32
    %c0_i32_1 = arith.constant 0 : i32
    return %arg0, %c0_i32, %c0_i32_0 : i32, i32, i32
  }
}

</mosaic_0001>

<llo_original>
// kernel: tpu_custom_call.1
$region0: #{tpu_custom_call.1}
  #allocation0 [shape = 'u32[]', space=smem, size = 0x4, offset = 0x4, fixed_abs, tag = 'smem constant byte address 0x4 - core index']
  #allocation1 [shape = 'u32[144,128]{1,0:T(1,128)}', space=vmem, size = 0x12000, scoped, tag = 'internal scratch']
  %s0 = inlined_call_operand.vmem [shape: f32[2,1,1], index: 0, kind: input, shape index: {}]
  %s1 = inlined_call_operand.hbm [shape: f32[2,8,32], index: 1, kind: input, shape index: {}]
  %s2 = inlined_call_operand.vmem [shape: f32[8,32], index: 2, kind: input, shape index: {}]
  %s3 = inlined_call_operand.hbm [shape: f32[32,32], index: 3, kind: input, shape index: {}]
  %s4 = inlined_call_operand.vmem [shape: f32[1,32], index: 4, kind: input, shape index: {}]
  %s5 = inlined_call_operand.hbm [shape: f32[32,32], index: 5, kind: input, shape index: {}]
  %s6 = inlined_call_operand.vmem [shape: f32[1,32], index: 6, kind: input, shape index: {}]
  %s7 = inlined_call_operand.hbm [shape: f32[2,8,32], index: 7, kind: output, shape index: {}]
  %s8 = sld [smem:[#allocation0]]
  $region50: #{tpu_custom_call.1} parent=0
    _
  %s10 = ssub.s32 1, %s8
  %s11 = scalar_select 0, %s10, %s8
  $region1: #{tpu_custom_call.1} parent=0
    #allocation2 [shape = 'u8[8192]{0}', space=vmem, size = 0x2000, scoped, tag = 'input window, operand 1, single buffered']
    #allocation3 [shape = 's32[1]{0}', space=sflag, size = 0x4, scoped, tag = 'scoped memory for tpu_custom_call.1']
    #allocation4 [shape = 's32[1]{0}', space=sflag, size = 0x4, scoped, tag = 'scoped memory for tpu_custom_call.1']
    #allocation5 [shape = 'u8[16384]{0}', space=vmem, size = 0x4000, scoped, tag = 'input window, operand 3, single buffered']
    #allocation6 [shape = 's32[1]{0}', space=sflag, size = 0x4, scoped, tag = 'scoped memory for tpu_custom_call.1']
    #allocation7 [shape = 'u8[16384]{0}', space=vmem, size = 0x4000, scoped, tag = 'input window, operand 5, single buffered']
    #allocation8 [shape = 'u8[8192]{0}', space=vmem, size = 0x2000, scoped, tag = 'output window, operand 0, single buffered']
    %12 = vsyncpa [#allocation3], 0
    %13 = vsyncpa [#allocation6], 0
    %14 = vsyncpa [#allocation4], 0
    // Predicated region
    $region2: #{tpu_custom_call.1} parent=1 // pred_check
      _
    $region3: #{tpu_custom_call.1} parent=1 // pred_check_branch
      %16 = sbr.rel (0) target = $region5
    $region4: #{tpu_custom_call.1} parent=1 // pred_region
      _
    $region5: #{tpu_custom_call.1} parent=1 // pred_fallthru
      _
    // Predicated region
    $region6: #{tpu_custom_call.1} parent=1 // pred_check
      _
    $region7: #{tpu_custom_call.1} parent=1 // pred_check_branch
      %18 = sbr.rel (0) target = $region9
    $region8: #{tpu_custom_call.1} parent=1 // pred_region
      %s20 = ssub.s32 256, 256
      %21 = vsyncadd [#allocation3], %s20
      %s22 = sshll.u32 [#allocation2], 4
      %s23 = int_to_ptr.vmem [resolvable:$true] %s22
      %28 = dma.hbm_to_vmem [thread:$0]  %s1, 256, %s23, [#allocation3], 128, 128, 8
    $region9: #{tpu_custom_call.1} parent=1 // pred_fallthru
      _
    // Predicated region
    $region10: #{tpu_custom_call.1} parent=1 // pred_check
      _
    $region11: #{tpu_custom_call.1} parent=1 // pred_check_branch
      %30 = sbr.rel (0) target = $region13
    $region12: #{tpu_custom_call.1} parent=1 // pred_region
      _
    $region13: #{tpu_custom_call.1} parent=1 // pred_fallthru
      _
    // Predicated region
    $region14: #{tpu_custom_call.1} parent=1 // pred_check
      _
    $region15: #{tpu_custom_call.1} parent=1 // pred_check_branch
      %32 = sbr.rel (0) target = $region17
    $region16: #{tpu_custom_call.1} parent=1 // pred_region
      %s34 = ssub.s32 512, 512
      %35 = vsyncadd [#allocation6], %s34
      %s36 = sshll.u32 [#allocation5], 4
      %s37 = int_to_ptr.vmem [resolvable:$true] %s36
      %42 = dma.hbm_to_vmem [thread:$0]  %s3, 512, %s37, [#allocation6], 128, 128, 8
    $region17: #{tpu_custom_call.1} parent=1 // pred_fallthru
      _
    // Predicated region
    $region18: #{tpu_custom_call.1} parent=1 // pred_check
      _
    $region19: #{tpu_custom_call.1} parent=1 // pred_check_branch
      %44 = sbr.rel (0) target = $region21
    $region20: #{tpu_custom_call.1} parent=1 // pred_region
      _
    $region21: #{tpu_custom_call.1} parent=1 // pred_fallthru
      _
    // Predicated region
    $region22: #{tpu_custom_call.1} parent=1 // pred_check
      _
    $region23: #{tpu_custom_call.1} parent=1 // pred_check_branch
      %46 = sbr.rel (0) target = $region25
    $region24: #{tpu_custom_call.1} parent=1 // pred_region
      %s48 = ssub.s32 512, 512
      %49 = vsyncadd [#allocation6], %s48
      %s50 = sshll.u32 [#allocation7], 4
      %s51 = int_to_ptr.vmem [resolvable:$true] %s50
      %56 = dma.hbm_to_vmem [thread:$0]  %s5, 512, %s51, [#allocation6], 128, 128, 8
    $region25: #{tpu_custom_call.1} parent=1 // pred_fallthru
      _
    // Predicated region
    $region26: #{tpu_custom_call.1} parent=1 // pred_check
      _
    $region27: #{tpu_custom_call.1} parent=1 // pred_check_branch
      %58 = sbr.rel (0) target = $region29
    $region28: #{tpu_custom_call.1} parent=1 // pred_region
      _
    $region29: #{tpu_custom_call.1} parent=1 // pred_fallthru
      _
    // Predicated region
    $region30: #{tpu_custom_call.1} parent=1 // pred_check
      _
    $region31: #{tpu_custom_call.1} parent=1 // pred_check_branch
      %60 = sbr.rel (0) target = $region33
    $region32: #{tpu_custom_call.1} parent=1 // pred_region
      %61 = dma.done [#allocation3], 256
    $region33: #{tpu_custom_call.1} parent=1 // pred_fallthru
      _
    // Predicated region
    $region34: #{tpu_custom_call.1} parent=1 // pred_check
      _
    $region35: #{tpu_custom_call.1} parent=1 // pred_check_branch
      %63 = sbr.rel (0) target = $region37
    $region36: #{tpu_custom_call.1} parent=1 // pred_region
      %64 = dma.done [#allocation6], 512
    $region37: #{tpu_custom_call.1} parent=1 // pred_fallthru
      _
    // Predicated region
    $region38: #{tpu_custom_call.1} parent=1 // pred_check
      _
    $region39: #{tpu_custom_call.1} parent=1 // pred_check_branch
      %66 = sbr.rel (0) target = $region41
    $region40: #{tpu_custom_call.1} parent=1 // pred_region
      %67 = dma.done [#allocation6], 512
    $region41: #{tpu_custom_call.1} parent=1 // pred_fallthru
      _
    %v68 = vld [vmem:[%s0] sm:$0x1]
    %v69 = vld [vmem:[%s0 + $0x1] sm:$0x1]
    %vm70 = vcmp.gt.f32.partialorder %v68, 0.5
    %vm71 = vcmp.gt.f32.partialorder %v69, 0.5
    %v72 = vld [vmem:[%s2] sm:$0xff]
    %v73 = vld [vmem:[#allocation2] sm:$0xff]
    %v74 = vld [vmem:[#allocation2 + $0x8] sm:$0xff]
    %v75 = vsel %vm70, 1, 0
    %v76 = vsel %vm71, 1, 0
    %v77 = vlaneseq
    %v78 = vshrl.u32 %v77, 7
    %v79 = vsub.s32 0, %v78
    %v80 = vrot.slane %v75, %v79
    %v81 = vlaneseq
    %v82 = vshrl.u32 %v81, 7
    %v83 = vsub.s32 0, %v82
    %v84 = vrot.slane %v76, %v83
    %85 = vset.pattern.permute.xlu0 0
    %86 = vperm.xlu0 %85, %v80
    %v87 = vpop.permute.xlu0 %86
    %88 = vset.pattern.permute.xlu0 0
    %89 = vperm.xlu0 %88, %v84
    %v90 = vpop.permute.xlu0 %89
    %vm91 = vcmp.eq.s32.totalorder %v87, 1
    %vm92 = vcmp.eq.s32.totalorder %v90, 1
    %v93 = vsel %vm91, %v72, %v73
    %v94 = vsel %vm92, %v72, %v74
    %v95 = vld [vmem:[#allocation5] sm:$0xff]
    %v96 = vld [vmem:[#allocation5 + $0x8] sm:$0xff]
    %v97 = vld [vmem:[#allocation5 + $0x10] sm:$0xff]
    %v98 = vld [vmem:[#allocation5 + $0x18] sm:$0xff]
    %v99 = vld [vmem:[%s4] sm:$0x1]
    %v101 = vlaneseq
    %v102 = vshrl.u32 %v101, 7
    %v103 = vsub.s32 0, %v102
    %v104 = vrot.slane %v99, %v103
    %vm106 = vcmask 261120
    %v108 = vsel %vm106, %v93, 0
    %v111 = vsel %vm106, %v94, 0
    %113 = vmatprep.subr.mxu0 0.0
    %v114 = vand.u32 %v95, 4294901760
    %115 = vmatpush1.msra.mxu0 %v114
    %116 = vmatprep.subr.mxu0 0.0
    %v117 = vand.u32 %v96, 4294901760
    %118 = vmatpush1.msra.mxu0 %v117
    %119 = vmatprep.subr.mxu0 0.0
    %v120 = vand.u32 %v97, 4294901760
    %121 = vmatpush1.msra.mxu0 %v120
    %122 = vmatprep.subr.mxu0 0.0
    %v123 = vand.u32 %v98, 4294901760
    %124 = vmatpush1.msra.mxu0 %v123
    %125 = vmatprep.subr.mxu0 0.0
    %126 = vmatpush1.msra.mxu0 0.0
    %127 = vmatprep.subr.mxu0 0.0
    %128 = vmatpush1.msra.mxu0 0.0
    %129 = vmatprep.subr.mxu0 0.0
    %130 = vmatpush1.msra.mxu0 0.0
    %131 = vmatprep.subr.mxu0 0.0
    %132 = vmatpush1.msra.mxu0 0.0
    %133 = vmatprep.subr.mxu0 0.0
    %134 = vmatpush1.msra.mxu0 0.0
    %135 = vmatprep.subr.mxu0 0.0
    %136 = vmatpush1.msra.mxu0 0.0
    %137 = vmatprep.subr.mxu0 0.0
    %138 = vmatpush1.msra.mxu0 0.0
    %139 = vmatprep.subr.mxu0 0.0
    %140 = vmatpush1.msra.mxu0 0.0
    %141 = vmatprep.subr.mxu0 0.0
    %142 = vmatpush1.msra.mxu0 0.0
    %143 = vmatprep.subr.mxu0 0.0
    %144 = vmatpush1.msra.mxu0 0.0
    %145 = vmatprep.subr.mxu0 0.0
    %146 = vmatpush1.msra.mxu0 0.0
    %147 = vmatprep.subr.mxu0 0.0
    %148 = vmatpush1.msra.mxu0 0.0
    %149 = vmatprep.subr.mxu0 0.0
    %150 = vmatpush1.msra.mxu0 0.0
    %151 = vmatprep.subr.mxu0 0.0
    %152 = vmatpush1.msra.mxu0 0.0
    %153 = vmatprep.subr.mxu0 0.0
    %154 = vmatpush1.msra.mxu0 0.0
    %155 = vmatprep.subr.mxu0 0.0
    %156 = vmatpush1.msra.mxu0 0.0
    %157 = vmatprep.subr.mxu0 0.0
    %158 = vmatpush1.msra.mxu0 0.0
    %159 = vmatprep.subr.mxu0 0.0
    %160 = vmatpush1.msra.mxu0 0.0
    %161 = vmatprep.subr.mxu0 0.0
    %162 = vmatpush1.msra.mxu0 0.0
    %163 = vmatprep.subr.mxu0 0.0
    %164 = vmatpush1.msra.mxu0 0.0
    %165 = vmatprep.subr.mxu0 0.0
    %166 = vmatpush1.msra.mxu0 0.0
    %167 = vmatprep.subr.mxu0 0.0
    %168 = vmatpush1.msra.mxu0 0.0
    %169 = vmatprep.subr.mxu0 0.0
    %170 = vmatpush1.msra.mxu0 0.0
    %171 = vmatprep.subr.mxu0 0.0
    %172 = vmatpush1.msra.mxu0 0.0
    %173 = vmatprep.subr.mxu0 0.0
    %174 = vmatpush1.msra.mxu0 0.0
    %175 = vmatprep.subr.mxu0 0.0
    %176 = vmatpush1.msra.mxu0 0.0
    %177 = vmatprep.subr.mxu0 0.0
    %178 = vmatpush1.msra.mxu0 0.0
    %179 = vmatprep.subr.mxu0 0.0
    %180 = vmatpush1.msra.mxu0 0.0
    %181 = vmatprep.mubr.f32.mxu0 0.0
    %v182 = vand.u32 %v108, 4294901760
    %v183 = vsub.f32 %v108, %v182
    %v184 = vand.u32 %v183, 4294901760
    %v185 = vsub.f32 %v183, %v184
    %v186 = vand.u32 %v185, 4294901760
    %187 = vmatmul.mubr.f32.gmra.mrb[0].mxu0 %v186
    %v188 = vpop.f32.mrb[0].mxu0
    %v189 = vadd.f32 %v104, %v188
    %v190 = vpop.f32.mrb[0].mxu0
    %191 = vmatprep.mubr.f32.mxu0 0.0
    %v192 = vand.u32 %v111, 4294901760
    %v193 = vsub.f32 %v111, %v192
    %v194 = vand.u32 %v193, 4294901760
    %v195 = vsub.f32 %v193, %v194
    %v196 = vand.u32 %v195, 4294901760
    %197 = vmatmul.mubr.f32.gmra.mrb[0].mxu0 %v196
    %v198 = vpop.f32.mrb[0].mxu0
    %v199 = vadd.f32 %v104, %v198
    %v200 = vpop.f32.mrb[0].mxu0
    %201 = vdwg.mxu0
    %202 = vmatprep.subr.mxu0 0.0
    %v203 = vand.u32 %v95, 4294901760
    %v204 = vsub.f32 %v95, %v203
    %v205 = vand.u32 %v204, 4294901760
    %v206 = vsub.f32 %v204, %v205
    %v207 = vand.u32 %v206, 4294901760
    %208 = vmatpush1.msra.mxu0 %v207
    %209 = vmatprep.subr.mxu0 0.0
    %v210 = vand.u32 %v96, 4294901760
    %v211 = vsub.f32 %v96, %v210
    %v212 = vand.u32 %v211, 4294901760
    %v213 = vsub.f32 %v211, %v212
    %v214 = vand.u32 %v213, 4294901760
    %215 = vmatpush1.msra.mxu0 %v214
    %216 = vmatprep.subr.mxu0 0.0
    %v217 = vand.u32 %v97, 4294901760
    %v218 = vsub.f32 %v97, %v217
    %v219 = vand.u32 %v218, 4294901760
    %v220 = vsub.f32 %v218, %v219
    %v221 = vand.u32 %v220, 4294901760
    %222 = vmatpush1.msra.mxu0 %v221
    %223 = vmatprep.subr.mxu0 0.0
    %v224 = vand.u32 %v98, 4294901760
    %v225 = vsub.f32 %v98, %v224
    %v226 = vand.u32 %v225, 4294901760
    %v227 = vsub.f32 %v225, %v226
    %v228 = vand.u32 %v227, 4294901760
    %229 = vmatpush1.msra.mxu0 %v228
    %230 = vmatprep.subr.mxu0 0.0
    %231 = vmatpush1.msra.mxu0 0.0
    %232 = vmatprep.subr.mxu0 0.0
    %233 = vmatpush1.msra.mxu0 0.0
    %234 = vmatprep.subr.mxu0 0.0
    %235 = vmatpush1.msra.mxu0 0.0
    %236 = vmatprep.subr.mxu0 0.0
    %237 = vmatpush1.msra.mxu0 0.0
    %238 = vmatprep.subr.mxu0 0.0
    %239 = vmatpush1.msra.mxu0 0.0
    %240 = vmatprep.subr.mxu0 0.0
    %241 = vmatpush1.msra.mxu0 0.0
    %242 = vmatprep.subr.mxu0 0.0
    %243 = vmatpush1.msra.mxu0 0.0
    %244 = vmatprep.subr.mxu0 0.0
    %245 = vmatpush1.msra.mxu0 0.0
    %246 = vmatprep.subr.mxu0 0.0
    %247 = vmatpush1.msra.mxu0 0.0
    %248 = vmatprep.subr.mxu0 0.0
    %249 = vmatpush1.msra.mxu0 0.0
    %250 = vmatprep.subr.mxu0 0.0
    %251 = vmatpush1.msra.mxu0 0.0
    %252 = vmatprep.subr.mxu0 0.0
    %253 = vmatpush1.msra.mxu0 0.0
    %254 = vmatprep.subr.mxu0 0.0
    %255 = vmatpush1.msra.mxu0 0.0
    %256 = vmatprep.subr.mxu0 0.0
    %257 = vmatpush1.msra.mxu0 0.0
    %258 = vmatprep.subr.mxu0 0.0
    %259 = vmatpush1.msra.mxu0 0.0
    %260 = vmatprep.subr.mxu0 0.0
    %261 = vmatpush1.msra.mxu0 0.0
    %262 = vmatprep.subr.mxu0 0.0
    %263 = vmatpush1.msra.mxu0 0.0
    %264 = vmatprep.subr.mxu0 0.0
    %265 = vmatpush1.msra.mxu0 0.0
    %266 = vmatprep.subr.mxu0 0.0
    %267 = vmatpush1.msra.mxu0 0.0
    %268 = vmatprep.subr.mxu0 0.0
    %269 = vmatpush1.msra.mxu0 0.0
    %270 = vmatprep.subr.mxu0 0.0
    %271 = vmatpush1.msra.mxu0 0.0
    %272 = vmatprep.subr.mxu0 0.0
    %273 = vmatpush1.msra.mxu0 0.0
    %274 = vmatprep.subr.mxu0 0.0
    %275 = vmatpush1.msra.mxu0 0.0
    %276 = vmatprep.subr.mxu0 0.0
    %277 = vmatpush1.msra.mxu0 0.0
    %278 = vmatprep.subr.mxu0 0.0
    %279 = vmatpush1.msra.mxu0 0.0
    %280 = vmatprep.subr.mxu0 0.0
    %281 = vmatpush1.msra.mxu0 0.0
    %282 = vmatprep.subr.mxu0 0.0
    %283 = vmatpush1.msra.mxu0 0.0
    %284 = vmatprep.subr.mxu0 0.0
    %285 = vmatpush1.msra.mxu0 0.0
    %286 = vmatprep.mubr.f32.mxu0 0.0
    %v287 = vand.u32 %v108, 4294901760
    %288 = vmatmul.mubr.f32.gmra.mrb[0].mxu0 %v287
    %v289 = vpop.f32.mrb[0].mxu0
    %v290 = vadd.f32 %v189, %v289
    %v291 = vpop.f32.mrb[0].mxu0
    %292 = vmatprep.mubr.f32.mxu0 0.0
    %v293 = vand.u32 %v111, 4294901760
    %294 = vmatmul.mubr.f32.gmra.mrb[0].mxu0 %v293
    %v295 = vpop.f32.mrb[0].mxu0
    %v296 = vadd.f32 %v199, %v295
    %v297 = vpop.f32.mrb[0].mxu0
    %298 = vdwg.mxu0
    %299 = vmatprep.subr.mxu0 0.0
    %v300 = vand.u32 %v95, 4294901760
    %v301 = vsub.f32 %v95, %v300
    %302 = vmatpush1.msra.mxu0 %v301
    %303 = vmatprep.subr.mxu0 0.0
    %v304 = vand.u32 %v96, 4294901760
    %v305 = vsub.f32 %v96, %v304
    %306 = vmatpush1.msra.mxu0 %v305
    %307 = vmatprep.subr.mxu0 0.0
    %v308 = vand.u32 %v97, 4294901760
    %v309 = vsub.f32 %v97, %v308
    %310 = vmatpush1.msra.mxu0 %v309
    %311 = vmatprep.subr.mxu0 0.0
    %v312 = vand.u32 %v98, 4294901760
    %v313 = vsub.f32 %v98, %v312
    %314 = vmatpush1.msra.mxu0 %v313
    %315 = vmatprep.subr.mxu0 0.0
    %316 = vmatpush1.msra.mxu0 0.0
    %317 = vmatprep.subr.mxu0 0.0
    %318 = vmatpush1.msra.mxu0 0.0
    %319 = vmatprep.subr.mxu0 0.0
    %320 = vmatpush1.msra.mxu0 0.0
    %321 = vmatprep.subr.mxu0 0.0
    %322 = vmatpush1.msra.mxu0 0.0
    %323 = vmatprep.subr.mxu0 0.0
    %324 = vmatpush1.msra.mxu0 0.0
    %325 = vmatprep.subr.mxu0 0.0
    %326 = vmatpush1.msra.mxu0 0.0
    %327 = vmatprep.subr.mxu0 0.0
    %328 = vmatpush1.msra.mxu0 0.0
    %329 = vmatprep.subr.mxu0 0.0
    %330 = vmatpush1.msra.mxu0 0.0
    %331 = vmatprep.subr.mxu0 0.0
    %332 = vmatpush1.msra.mxu0 0.0
    %333 = vmatprep.subr.mxu0 0.0
    %334 = vmatpush1.msra.mxu0 0.0
    %335 = vmatprep.subr.mxu0 0.0
    %336 = vmatpush1.msra.mxu0 0.0
    %337 = vmatprep.subr.mxu0 0.0
    %338 = vmatpush1.msra.mxu0 0.0
    %339 = vmatprep.subr.mxu0 0.0
    %340 = vmatpush1.msra.mxu0 0.0
    %341 = vmatprep.subr.mxu0 0.0
    %342 = vmatpush1.msra.mxu0 0.0
    %343 = vmatprep.subr.mxu0 0.0
    %344 = vmatpush1.msra.mxu0 0.0
    %345 = vmatprep.subr.mxu0 0.0
    %346 = vmatpush1.msra.mxu0 0.0
    %347 = vmatprep.subr.mxu0 0.0
    %348 = vmatpush1.msra.mxu0 0.0
    %349 = vmatprep.subr.mxu0 0.0
    %350 = vmatpush1.msra.mxu0 0.0
    %351 = vmatprep.subr.mxu0 0.0
    %352 = vmatpush1.msra.mxu0 0.0
    %353 = vmatprep.subr.mxu0 0.0
    %354 = vmatpush1.msra.mxu0 0.0
    %355 = vmatprep.subr.mxu0 0.0
    %356 = vmatpush1.msra.mxu0 0.0
    %357 = vmatprep.subr.mxu0 0.0
    %358 = vmatpush1.msra.mxu0 0.0
    %359 = vmatprep.subr.mxu0 0.0
    %360 = vmatpush1.msra.mxu0 0.0
    %361 = vmatprep.subr.mxu0 0.0
    %362 = vmatpush1.msra.mxu0 0.0
    %363 = vmatprep.subr.mxu0 0.0
    %364 = vmatpush1.msra.mxu0 0.0
    %365 = vmatprep.subr.mxu0 0.0
    %366 = vmatpush1.msra.mxu0 0.0
    %367 = vmatprep.subr.mxu0 0.0
    %368 = vmatpush1.msra.mxu0 0.0
    %369 = vmatprep.subr.mxu0 0.0
    %370 = vmatpush1.msra.mxu0 0.0
    %371 = vmatprep.mubr.f32.mxu0 0.0
    %v372 = vand.u32 %v108, 4294901760
    %v373 = vsub.f32 %v108, %v372
    %374 = vmatmul.mubr.f32.gmra.mrb[0].mxu0 %v373
    %v375 = vpop.f32.mrb[0].mxu0
    %v376 = vadd.f32 %v290, %v375
    %v377 = vpop.f32.mrb[0].mxu0
    %378 = vmatprep.mubr.f32.mxu0 0.0
    %v379 = vand.u32 %v111, 4294901760
    %v380 = vsub.f32 %v111, %v379
    %381 = vmatmul.mubr.f32.gmra.mrb[0].mxu0 %v380
    %v382 = vpop.f32.mrb[0].mxu0
    %v383 = vadd.f32 %v296, %v382
    %v384 = vpop.f32.mrb[0].mxu0
    %385 = vdwg.mxu0
    %386 = vmatprep.subr.mxu0 0.0
    %v387 = vand.u32 %v95, 4294901760
    %388 = vmatpush1.msra.mxu0 %v387
    %389 = vmatprep.subr.mxu0 0.0
    %v390 = vand.u32 %v96, 4294901760
    %391 = vmatpush1.msra.mxu0 %v390
    %392 = vmatprep.subr.mxu0 0.0
    %v393 = vand.u32 %v97, 4294901760
    %394 = vmatpush1.msra.mxu0 %v393
    %395 = vmatprep.subr.mxu0 0.0
    %v396 = vand.u32 %v98, 4294901760
    %397 = vmatpush1.msra.mxu0 %v396
    %398 = vmatprep.subr.mxu0 0.0
    %399 = vmatpush1.msra.mxu0 0.0
    %400 = vmatprep.subr.mxu0 0.0
    %401 = vmatpush1.msra.mxu0 0.0
    %402 = vmatprep.subr.mxu0 0.0
    %403 = vmatpush1.msra.mxu0 0.0
    %404 = vmatprep.subr.mxu0 0.0
    %405 = vmatpush1.msra.mxu0 0.0
    %406 = vmatprep.subr.mxu0 0.0
    %407 = vmatpush1.msra.mxu0 0.0
    %408 = vmatprep.subr.mxu0 0.0
    %409 = vmatpush1.msra.mxu0 0.0
    %410 = vmatprep.subr.mxu0 0.0
    %411 = vmatpush1.msra.mxu0 0.0
    %412 = vmatprep.subr.mxu0 0.0
    %413 = vmatpush1.msra.mxu0 0.0
    %414 = vmatprep.subr.mxu0 0.0
    %415 = vmatpush1.msra.mxu0 0.0
    %416 = vmatprep.subr.mxu0 0.0
    %417 = vmatpush1.msra.mxu0 0.0
    %418 = vmatprep.subr.mxu0 0.0
    %419 = vmatpush1.msra.mxu0 0.0
    %420 = vmatprep.subr.mxu0 0.0
    %421 = vmatpush1.msra.mxu0 0.0
    %422 = vmatprep.subr.mxu0 0.0
    %423 = vmatpush1.msra.mxu0 0.0
    %424 = vmatprep.subr.mxu0 0.0
    %425 = vmatpush1.msra.mxu0 0.0
    %426 = vmatprep.subr.mxu0 0.0
    %427 = vmatpush1.msra.mxu0 0.0
    %428 = vmatprep.subr.mxu0 0.0
    %429 = vmatpush1.msra.mxu0 0.0
    %430 = vmatprep.subr.mxu0 0.0
    %431 = vmatpush1.msra.mxu0 0.0
    %432 = vmatprep.subr.mxu0 0.0
    %433 = vmatpush1.msra.mxu0 0.0
    %434 = vmatprep.subr.mxu0 0.0
    %435 = vmatpush1.msra.mxu0 0.0
    %436 = vmatprep.subr.mxu0 0.0
    %437 = vmatpush1.msra.mxu0 0.0
    %438 = vmatprep.subr.mxu0 0.0
    %439 = vmatpush1.msra.mxu0 0.0
    %440 = vmatprep.subr.mxu0 0.0
    %441 = vmatpush1.msra.mxu0 0.0
    %442 = vmatprep.subr.mxu0 0.0
    %443 = vmatpush1.msra.mxu0 0.0
    %444 = vmatprep.subr.mxu0 0.0
    %445 = vmatpush1.msra.mxu0 0.0
    %446 = vmatprep.subr.mxu0 0.0
    %447 = vmatpush1.msra.mxu0 0.0
    %448 = vmatprep.subr.mxu0 0.0
    %449 = vmatpush1.msra.mxu0 0.0
    %450 = vmatprep.subr.mxu0 0.0
    %451 = vmatpush1.msra.mxu0 0.0
    %452 = vmatprep.subr.mxu0 0.0
    %453 = vmatpush1.msra.mxu0 0.0
    %454 = vmatprep.mubr.f32.mxu0 0.0
    %v455 = vand.u32 %v108, 4294901760
    %v456 = vsub.f32 %v108, %v455
    %v457 = vand.u32 %v456, 4294901760
    %458 = vmatmul.mubr.f32.gmra.mrb[0].mxu0 %v457
    %v459 = vpop.f32.mrb[0].mxu0
    %v460 = vadd.f32 %v376, %v459
    %v461 = vpop.f32.mrb[0].mxu0
    %462 = vmatprep.mubr.f32.mxu0 0.0
    %v463 = vand.u32 %v111, 4294901760
    %v464 = vsub.f32 %v111, %v463
    %v465 = vand.u32 %v464, 4294901760
    %466 = vmatmul.mubr.f32.gmra.mrb[0].mxu0 %v465
    %v467 = vpop.f32.mrb[0].mxu0
    %v468 = vadd.f32 %v383, %v467
    %v469 = vpop.f32.mrb[0].mxu0
    %470 = vdwg.mxu0
    %471 = vmatprep.subr.mxu0 0.0
    %v472 = vand.u32 %v95, 4294901760
    %v473 = vsub.f32 %v95, %v472
    %v474 = vand.u32 %v473, 4294901760
    %475 = vmatpush1.msra.mxu0 %v474
    %476 = vmatprep.subr.mxu0 0.0
    %v477 = vand.u32 %v96, 4294901760
    %v478 = vsub.f32 %v96, %v477
    %v479 = vand.u32 %v478, 4294901760
    %480 = vmatpush1.msra.mxu0 %v479
    %481 = vmatprep.subr.mxu0 0.0
    %v482 = vand.u32 %v97, 4294901760
    %v483 = vsub.f32 %v97, %v482
    %v484 = vand.u32 %v483, 4294901760
    %485 = vmatpush1.msra.mxu0 %v484
    %486 = vmatprep.subr.mxu0 0.0
    %v487 = vand.u32 %v98, 4294901760
    %v488 = vsub.f32 %v98, %v487
    %v489 = vand.u32 %v488, 4294901760
    %490 = vmatpush1.msra.mxu0 %v489
    %491 = vmatprep.subr.mxu0 0.0
    %492 = vmatpush1.msra.mxu0 0.0
    %493 = vmatprep.subr.mxu0 0.0
    %494 = vmatpush1.msra.mxu0 0.0
    %495 = vmatprep.subr.mxu0 0.0
    %496 = vmatpush1.msra.mxu0 0.0
    %497 = vmatprep.subr.mxu0 0.0
    %498 = vmatpush1.msra.mxu0 0.0
    %499 = vmatprep.subr.mxu0 0.0
    %500 = vmatpush1.msra.mxu0 0.0
    %501 = vmatprep.subr.mxu0 0.0
    %502 = vmatpush1.msra.mxu0 0.0
    %503 = vmatprep.subr.mxu0 0.0
    %504 = vmatpush1.msra.mxu0 0.0
    %505 = vmatprep.subr.mxu0 0.0
    %506 = vmatpush1.msra.mxu0 0.0
    %507 = vmatprep.subr.mxu0 0.0
    %508 = vmatpush1.msra.mxu0 0.0
    %509 = vmatprep.subr.mxu0 0.0
    %510 = vmatpush1.msra.mxu0 0.0
    %511 = vmatprep.subr.mxu0 0.0
    %512 = vmatpush1.msra.mxu0 0.0
    %513 = vmatprep.subr.mxu0 0.0
    %514 = vmatpush1.msra.mxu0 0.0
    %515 = vmatprep.subr.mxu0 0.0
    %516 = vmatpush1.msra.mxu0 0.0
    %517 = vmatprep.subr.mxu0 0.0
    %518 = vmatpush1.msra.mxu0 0.0
    %519 = vmatprep.subr.mxu0 0.0
    %520 = vmatpush1.msra.mxu0 0.0
    %521 = vmatprep.subr.mxu0 0.0
    %522 = vmatpush1.msra.mxu0 0.0
    %523 = vmatprep.subr.mxu0 0.0
    %524 = vmatpush1.msra.mxu0 0.0
    %525 = vmatprep.subr.mxu0 0.0
    %526 = vmatpush1.msra.mxu0 0.0
    %527 = vmatprep.subr.mxu0 0.0
    %528 = vmatpush1.msra.mxu0 0.0
    %529 = vmatprep.subr.mxu0 0.0
    %530 = vmatpush1.msra.mxu0 0.0
    %531 = vmatprep.subr.mxu0 0.0
    %532 = vmatpush1.msra.mxu0 0.0
    %533 = vmatprep.subr.mxu0 0.0
    %534 = vmatpush1.msra.mxu0 0.0
    %535 = vmatprep.subr.mxu0 0.0
    %536 = vmatpush1.msra.mxu0 0.0
    %537 = vmatprep.subr.mxu0 0.0
    %538 = vmatpush1.msra.mxu0 0.0
    %539 = vmatprep.subr.mxu0 0.0
    %540 = vmatpush1.msra.mxu0 0.0
    %541 = vmatprep.subr.mxu0 0.0
    %542 = vmatpush1.msra.mxu0 0.0
    %543 = vmatprep.subr.mxu0 0.0
    %544 = vmatpush1.msra.mxu0 0.0
    %545 = vmatprep.subr.mxu0 0.0
    %546 = vmatpush1.msra.mxu0 0.0
    %547 = vmatprep.mubr.f32.mxu0 0.0
    %v548 = vand.u32 %v108, 4294901760
    %549 = vmatmul.mubr.f32.gmra.mrb[0].mxu0 %v548
    %v550 = vpop.f32.mrb[0].mxu0
    %v551 = vadd.f32 %v460, %v550
    %v552 = vpop.f32.mrb[0].mxu0
    %553 = vmatprep.mubr.f32.mxu0 0.0
    %v554 = vand.u32 %v111, 4294901760
    %555 = vmatmul.mubr.f32.gmra.mrb[0].mxu0 %v554
    %v556 = vpop.f32.mrb[0].mxu0
    %v557 = vadd.f32 %v468, %v556
    %v558 = vpop.f32.mrb[0].mxu0
    %559 = vdwg.mxu0
    %560 = vmatprep.subr.mxu0 0.0
    %v561 = vand.u32 %v95, 4294901760
    %562 = vmatpush1.msra.mxu0 %v561
    %563 = vmatprep.subr.mxu0 0.0
    %v564 = vand.u32 %v96, 4294901760
    %565 = vmatpush1.msra.mxu0 %v564
    %566 = vmatprep.subr.mxu0 0.0
    %v567 = vand.u32 %v97, 4294901760
    %568 = vmatpush1.msra.mxu0 %v567
    %569 = vmatprep.subr.mxu0 0.0
    %v570 = vand.u32 %v98, 4294901760
    %571 = vmatpush1.msra.mxu0 %v570
    %572 = vmatprep.subr.mxu0 0.0
    %573 = vmatpush1.msra.mxu0 0.0
    %574 = vmatprep.subr.mxu0 0.0
    %575 = vmatpush1.msra.mxu0 0.0
    %576 = vmatprep.subr.mxu0 0.0
    %577 = vmatpush1.msra.mxu0 0.0
    %578 = vmatprep.subr.mxu0 0.0
    %579 = vmatpush1.msra.mxu0 0.0
    %580 = vmatprep.subr.mxu0 0.0
    %581 = vmatpush1.msra.mxu0 0.0
    %582 = vmatprep.subr.mxu0 0.0
    %583 = vmatpush1.msra.mxu0 0.0
    %584 = vmatprep.subr.mxu0 0.0
    %585 = vmatpush1.msra.mxu0 0.0
    %586 = vmatprep.subr.mxu0 0.0
    %587 = vmatpush1.msra.mxu0 0.0
    %588 = vmatprep.subr.mxu0 0.0
    %589 = vmatpush1.msra.mxu0 0.0
    %590 = vmatprep.subr.mxu0 0.0
    %591 = vmatpush1.msra.mxu0 0.0
    %592 = vmatprep.subr.mxu0 0.0
    %593 = vmatpush1.msra.mxu0 0.0
    %594 = vmatprep.subr.mxu0 0.0
    %595 = vmatpush1.msra.mxu0 0.0
    %596 = vmatprep.subr.mxu0 0.0
    %597 = vmatpush1.msra.mxu0 0.0
    %598 = vmatprep.subr.mxu0 0.0
    %599 = vmatpush1.msra.mxu0 0.0
    %600 = vmatprep.subr.mxu0 0.0
    %601 = vmatpush1.msra.mxu0 0.0
    %602 = vmatprep.subr.mxu0 0.0
    %603 = vmatpush1.msra.mxu0 0.0
    %604 = vmatprep.subr.mxu0 0.0
    %605 = vmatpush1.msra.mxu0 0.0
    %606 = vmatprep.subr.mxu0 0.0
    %607 = vmatpush1.msra.mxu0 0.0
    %608 = vmatprep.subr.mxu0 0.0
    %609 = vmatpush1.msra.mxu0 0.0
    %610 = vmatprep.subr.mxu0 0.0
    %611 = vmatpush1.msra.mxu0 0.0
    %612 = vmatprep.subr.mxu0 0.0
    %613 = vmatpush1.msra.mxu0 0.0
    %614 = vmatprep.subr.mxu0 0.0
    %615 = vmatpush1.msra.mxu0 0.0
    %616 = vmatprep.subr.mxu0 0.0
    %617 = vmatpush1.msra.mxu0 0.0
    %618 = vmatprep.subr.mxu0 0.0
    %619 = vmatpush1.msra.mxu0 0.0
    %620 = vmatprep.subr.mxu0 0.0
    %621 = vmatpush1.msra.mxu0 0.0
    %622 = vmatprep.subr.mxu0 0.0
    %623 = vmatpush1.msra.mxu0 0.0
    %624 = vmatprep.subr.mxu0 0.0
    %625 = vmatpush1.msra.mxu0 0.0
    %626 = vmatprep.subr.mxu0 0.0
    %627 = vmatpush1.msra.mxu0 0.0
    %628 = vmatprep.mubr.f32.mxu0 0.0
    %v629 = vand.u32 %v108, 4294901760
    %630 = vmatmul.mubr.f32.gmra.mrb[0].mxu0 %v629
    %v631 = vpop.f32.mrb[0].mxu0
    %v632 = vadd.f32 %v551, %v631
    %v633 = vpop.f32.mrb[0].mxu0
    %634 = vmatprep.mubr.f32.mxu0 0.0
    %v635 = vand.u32 %v111, 4294901760
    %636 = vmatmul.mubr.f32.gmra.mrb[0].mxu0 %v635
    %v637 = vpop.f32.mrb[0].mxu0
    %v638 = vadd.f32 %v557, %v637
    %v639 = vpop.f32.mrb[0].mxu0
    %640 = vdwg.mxu0
    %v641 = vmul.f32 %v632, 0.5
    %v642 = vmul.f32 %v638, 0.5
    %v643 = vmul.f32 %v632, 0.044715
    %v644 = vmul.f32 %v638, 0.044715
    %v645 = vmul.f32 %v643, %v632
    %v646 = vmul.f32 %v644, %v638
    %v647 = vmul.f32 %v645, %v632
    %v648 = vmul.f32 %v646, %v638
    %v649 = vadd.f32 %v632, %v647
    %v650 = vadd.f32 %v638, %v648
    %v651 = vmul.f32 %v649, 0.7978846
    %v652 = vmul.f32 %v650, 0.7978846
    %v653 = vtanh.pop %v651
    %v654 = vtanh.pop %v652
    %v655 = vadd.f32 %v653, 1.0
    %v656 = vadd.f32 %v654, 1.0
    %v657 = vmul.f32 %v641, %v655
    %v658 = vmul.f32 %v642, %v656
    %v659 = vld [vmem:[#allocation7] sm:$0xff]
    %v660 = vld [vmem:[#allocation7 + $0x8] sm:$0xff]
    %v661 = vld [vmem:[#allocation7 + $0x10] sm:$0xff]
    %v662 = vld [vmem:[#allocation7 + $0x18] sm:$0xff]
    %v663 = vld [vmem:[%s6] sm:$0x1]
    %v665 = vlaneseq
    %v666 = vshrl.u32 %v665, 7
    %v667 = vsub.s32 0, %v666
    %v668 = vrot.slane %v663, %v667
    %v671 = vsel %vm106, %v657, 0
    %v674 = vsel %vm106, %v658, 0
    %676 = vmatprep.subr.mxu0 0.0
    %v677 = vand.u32 %v659, 4294901760
    %678 = vmatpush1.msra.mxu0 %v677
    %679 = vmatprep.subr.mxu0 0.0
    %v680 = vand.u32 %v660, 4294901760
    %681 = vmatpush1.msra.mxu0 %v680
    %682 = vmatprep.subr.mxu0 0.0
    %v683 = vand.u32 %v661, 4294901760
    %684 = vmatpush1.msra.mxu0 %v683
    %685 = vmatprep.subr.mxu0 0.0
    %v686 = vand.u32 %v662, 4294901760
    %687 = vmatpush1.msra.mxu0 %v686
    %688 = vmatprep.subr.mxu0 0.0
    %689 = vmatpush1.msra.mxu0 0.0
    %690 = vmatprep.subr.mxu0 0.0
    %691 = vmatpush1.msra.mxu0 0.0
    %692 = vmatprep.subr.mxu0 0.0
    %693 = vmatpush1.msra.mxu0 0.0
    %694 = vmatprep.subr.mxu0 0.0
    %695 = vmatpush1.msra.mxu0 0.0
    %696 = vmatprep.subr.mxu0 0.0
    %697 = vmatpush1.msra.mxu0 0.0
    %698 = vmatprep.subr.mxu0 0.0
    %699 = vmatpush1.msra.mxu0 0.0
    %700 = vmatprep.subr.mxu0 0.0
    %701 = vmatpush1.msra.mxu0 0.0
    %702 = vmatprep.subr.mxu0 0.0
    %703 = vmatpush1.msra.mxu0 0.0
    %704 = vmatprep.subr.mxu0 0.0
    %705 = vmatpush1.msra.mxu0 0.0
    %706 = vmatprep.subr.mxu0 0.0
    %707 = vmatpush1.msra.mxu0 0.0
    %708 = vmatprep.subr.mxu0 0.0
    %709 = vmatpush1.msra.mxu0 0.0
    %710 = vmatprep.subr.mxu0 0.0
    %711 = vmatpush1.msra.mxu0 0.0
    %712 = vmatprep.subr.mxu0 0.0
    %713 = vmatpush1.msra.mxu0 0.0
    %714 = vmatprep.subr.mxu0 0.0
    %715 = vmatpush1.msra.mxu0 0.0
    %716 = vmatprep.subr.mxu0 0.0
    %717 = vmatpush1.msra.mxu0 0.0
    %718 = vmatprep.subr.mxu0 0.0
    %719 = vmatpush1.msra.mxu0 0.0
    %720 = vmatprep.subr.mxu0 0.0
    %721 = vmatpush1.msra.mxu0 0.0
    %722 = vmatprep.subr.mxu0 0.0
    %723 = vmatpush1.msra.mxu0 0.0
    %724 = vmatprep.subr.mxu0 0.0
    %725 = vmatpush1.msra.mxu0 0.0
    %726 = vmatprep.subr.mxu0 0.0
    %727 = vmatpush1.msra.mxu0 0.0
    %728 = vmatprep.subr.mxu0 0.0
    %729 = vmatpush1.msra.mxu0 0.0
    %730 = vmatprep.subr.mxu0 0.0
    %731 = vmatpush1.msra.mxu0 0.0
    %732 = vmatprep.subr.mxu0 0.0
    %733 = vmatpush1.msra.mxu0 0.0
    %734 = vmatprep.subr.mxu0 0.0
    %735 = vmatpush1.msra.mxu0 0.0
    %736 = vmatprep.subr.mxu0 0.0
    %737 = vmatpush1.msra.mxu0 0.0
    %738 = vmatprep.subr.mxu0 0.0
    %739 = vmatpush1.msra.mxu0 0.0
    %740 = vmatprep.subr.mxu0 0.0
    %741 = vmatpush1.msra.mxu0 0.0
    %742 = vmatprep.subr.mxu0 0.0
    %743 = vmatpush1.msra.mxu0 0.0
    %744 = vmatprep.mubr.f32.mxu0 0.0
    %v745 = vand.u32 %v671, 4294901760
    %v746 = vsub.f32 %v671, %v745
    %v747 = vand.u32 %v746, 4294901760
    %v748 = vsub.f32 %v746, %v747
    %v749 = vand.u32 %v748, 4294901760
    %750 = vmatmul.mubr.f32.gmra.mrb[0].mxu0 %v749
    %v751 = vpop.f32.mrb[0].mxu0
    %v752 = vadd.f32 %v668, %v751
    %v753 = vpop.f32.mrb[0].mxu0
    %754 = vmatprep.mubr.f32.mxu0 0.0
    %v755 = vand.u32 %v674, 4294901760
    %v756 = vsub.f32 %v674, %v755
    %v757 = vand.u32 %v756, 4294901760
    %v758 = vsub.f32 %v756, %v757
    %v759 = vand.u32 %v758, 4294901760
    %760 = vmatmul.mubr.f32.gmra.mrb[0].mxu0 %v759
    %v761 = vpop.f32.mrb[0].mxu0
    %v762 = vadd.f32 %v668, %v761
    %v763 = vpop.f32.mrb[0].mxu0
    %764 = vdwg.mxu0
    %765 = vmatprep.subr.mxu0 0.0
    %v766 = vand.u32 %v659, 4294901760
    %v767 = vsub.f32 %v659, %v766
    %v768 = vand.u32 %v767, 4294901760
    %v769 = vsub.f32 %v767, %v768
    %v770 = vand.u32 %v769, 4294901760
    %771 = vmatpush1.msra.mxu0 %v770
    %772 = vmatprep.subr.mxu0 0.0
    %v773 = vand.u32 %v660, 4294901760
    %v774 = vsub.f32 %v660, %v773
    %v775 = vand.u32 %v774, 4294901760
    %v776 = vsub.f32 %v774, %v775
    %v777 = vand.u32 %v776, 4294901760
    %778 = vmatpush1.msra.mxu0 %v777
    %779 = vmatprep.subr.mxu0 0.0
    %v780 = vand.u32 %v661, 4294901760
    %v781 = vsub.f32 %v661, %v780
    %v782 = vand.u32 %v781, 4294901760
    %v783 = vsub.f32 %v781, %v782
    %v784 = vand.u32 %v783, 4294901760
    %785 = vmatpush1.msra.mxu0 %v784
    %786 = vmatprep.subr.mxu0 0.0
    %v787 = vand.u32 %v662, 4294901760
    %v788 = vsub.f32 %v662, %v787
    %v789 = vand.u32 %v788, 4294901760
    %v790 = vsub.f32 %v788, %v789
    %v791 = vand.u32 %v790, 4294901760
    %792 = vmatpush1.msra.mxu0 %v791
    %793 = vmatprep.subr.mxu0 0.0
    %794 = vmatpush1.msra.mxu0 0.0
    %795 = vmatprep.subr.mxu0 0.0
    %796 = vmatpush1.msra.mxu0 0.0
    %797 = vmatprep.subr.mxu0 0.0
    %798 = vmatpush1.msra.mxu0 0.0
    %799 = vmatprep.subr.mxu0 0.0
    %800 = vmatpush1.msra.mxu0 0.0
    %801 = vmatprep.subr.mxu0 0.0
    %802 = vmatpush1.msra.mxu0 0.0
    %803 = vmatprep.subr.mxu0 0.0
    %804 = vmatpush1.msra.mxu0 0.0
    %805 = vmatprep.subr.mxu0 0.0
    %806 = vmatpush1.msra.mxu0 0.0
    %807 = vmatprep.subr.mxu0 0.0
    %808 = vmatpush1.msra.mxu0 0.0
    %809 = vmatprep.subr.mxu0 0.0
    %810 = vmatpush1.msra.mxu0 0.0
    %811 = vmatprep.subr.mxu0 0.0
    %812 = vmatpush1.msra.mxu0 0.0
    %813 = vmatprep.subr.mxu0 0.0
    %814 = vmatpush1.msra.mxu0 0.0
    %815 = vmatprep.subr.mxu0 0.0
    %816 = vmatpush1.msra.mxu0 0.0
    %817 = vmatprep.subr.mxu0 0.0
    %818 = vmatpush1.msra.mxu0 0.0
    %819 = vmatprep.subr.mxu0 0.0
    %820 = vmatpush1.msra.mxu0 0.0
    %821 = vmatprep.subr.mxu0 0.0
    %822 = vmatpush1.msra.mxu0 0.0
    %823 = vmatprep.subr.mxu0 0.0
    %824 = vmatpush1.msra.mxu0 0.0
    %825 = vmatprep.subr.mxu0 0.0
    %826 = vmatpush1.msra.mxu0 0.0
    %827 = vmatprep.subr.mxu0 0.0
    %828 = vmatpush1.msra.mxu0 0.0
    %829 = vmatprep.subr.mxu0 0.0
    %830 = vmatpush1.msra.mxu0 0.0
    %831 = vmatprep.subr.mxu0 0.0
    %832 = vmatpush1.msra.mxu0 0.0
    %833 = vmatprep.subr.mxu0 0.0
    %834 = vmatpush1.msra.mxu0 0.0
    %835 = vmatprep.subr.mxu0 0.0
    %836 = vmatpush1.msra.mxu0 0.0
    %837 = vmatprep.subr.mxu0 0.0
    %838 = vmatpush1.msra.mxu0 0.0
    %839 = vmatprep.subr.mxu0 0.0
    %840 = vmatpush1.msra.mxu0 0.0
    %841 = vmatprep.subr.mxu0 0.0
    %842 = vmatpush1.msra.mxu0 0.0
    %843 = vmatprep.subr.mxu0 0.0
    %844 = vmatpush1.msra.mxu0 0.0
    %845 = vmatprep.subr.mxu0 0.0
    %846 = vmatpush1.msra.mxu0 0.0
    %847 = vmatprep.subr.mxu0 0.0
    %848 = vmatpush1.msra.mxu0 0.0
    %849 = vmatprep.mubr.f32.mxu0 0.0
    %v850 = vand.u32 %v671, 4294901760
    %851 = vmatmul.mubr.f32.gmra.mrb[0].mxu0 %v850
    %v852 = vpop.f32.mrb[0].mxu0
    %v853 = vadd.f32 %v752, %v852
    %v854 = vpop.f32.mrb[0].mxu0
    %855 = vmatprep.mubr.f32.mxu0 0.0
    %v856 = vand.u32 %v674, 4294901760
    %857 = vmatmul.mubr.f32.gmra.mrb[0].mxu0 %v856
    %v858 = vpop.f32.mrb[0].mxu0
    %v859 = vadd.f32 %v762, %v858
    %v860 = vpop.f32.mrb[0].mxu0
    %861 = vdwg.mxu0
    %862 = vmatprep.subr.mxu0 0.0
    %v863 = vand.u32 %v659, 4294901760
    %v864 = vsub.f32 %v659, %v863
    %865 = vmatpush1.msra.mxu0 %v864
    %866 = vmatprep.subr.mxu0 0.0
    %v867 = vand.u32 %v660, 4294901760
    %v868 = vsub.f32 %v660, %v867
    %869 = vmatpush1.msra.mxu0 %v868
    %870 = vmatprep.subr.mxu0 0.0
    %v871 = vand.u32 %v661, 4294901760
    %v872 = vsub.f32 %v661, %v871
    %873 = vmatpush1.msra.mxu0 %v872
    %874 = vmatprep.subr.mxu0 0.0
    %v875 = vand.u32 %v662, 4294901760
    %v876 = vsub.f32 %v662, %v875
    %877 = vmatpush1.msra.mxu0 %v876
    %878 = vmatprep.subr.mxu0 0.0
    %879 = vmatpush1.msra.mxu0 0.0
    %880 = vmatprep.subr.mxu0 0.0
    %881 = vmatpush1.msra.mxu0 0.0
    %882 = vmatprep.subr.mxu0 0.0
    %883 = vmatpush1.msra.mxu0 0.0
    %884 = vmatprep.subr.mxu0 0.0
    %885 = vmatpush1.msra.mxu0 0.0
    %886 = vmatprep.subr.mxu0 0.0
    %887 = vmatpush1.msra.mxu0 0.0
    %888 = vmatprep.subr.mxu0 0.0
    %889 = vmatpush1.msra.mxu0 0.0
    %890 = vmatprep.subr.mxu0 0.0
    %891 = vmatpush1.msra.mxu0 0.0
    %892 = vmatprep.subr.mxu0 0.0
    %893 = vmatpush1.msra.mxu0 0.0
    %894 = vmatprep.subr.mxu0 0.0
    %895 = vmatpush1.msra.mxu0 0.0
    %896 = vmatprep.subr.mxu0 0.0
    %897 = vmatpush1.msra.mxu0 0.0
    %898 = vmatprep.subr.mxu0 0.0
    %899 = vmatpush1.msra.mxu0 0.0
    %900 = vmatprep.subr.mxu0 0.0
    %901 = vmatpush1.msra.mxu0 0.0
    %902 = vmatprep.subr.mxu0 0.0
    %903 = vmatpush1.msra.mxu0 0.0
    %904 = vmatprep.subr.mxu0 0.0
    %905 = vmatpush1.msra.mxu0 0.0
    %906 = vmatprep.subr.mxu0 0.0
    %907 = vmatpush1.msra.mxu0 0.0
    %908 = vmatprep.subr.mxu0 0.0
    %909 = vmatpush1.msra.mxu0 0.0
    %910 = vmatprep.subr.mxu0 0.0
    %911 = vmatpush1.msra.mxu0 0.0
    %912 = vmatprep.subr.mxu0 0.0
    %913 = vmatpush1.msra.mxu0 0.0
    %914 = vmatprep.subr.mxu0 0.0
    %915 = vmatpush1.msra.mxu0 0.0
    %916 = vmatprep.subr.mxu0 0.0
    %917 = vmatpush1.msra.mxu0 0.0
    %918 = vmatprep.subr.mxu0 0.0
    %919 = vmatpush1.msra.mxu0 0.0
    %920 = vmatprep.subr.mxu0 0.0
    %921 = vmatpush1.msra.mxu0 0.0
    %922 = vmatprep.subr.mxu0 0.0
    %923 = vmatpush1.msra.mxu0 0.0
    %924 = vmatprep.subr.mxu0 0.0
    %925 = vmatpush1.msra.mxu0 0.0
    %926 = vmatprep.subr.mxu0 0.0
    %927 = vmatpush1.msra.mxu0 0.0
    %928 = vmatprep.subr.mxu0 0.0
    %929 = vmatpush1.msra.mxu0 0.0
    %930 = vmatprep.subr.mxu0 0.0
    %931 = vmatpush1.msra.mxu0 0.0
    %932 = vmatprep.subr.mxu0 0.0
    %933 = vmatpush1.msra.mxu0 0.0
    %934 = vmatprep.mubr.f32.mxu0 0.0
    %v935 = vand.u32 %v671, 4294901760
    %v936 = vsub.f32 %v671, %v935
    %937 = vmatmul.mubr.f32.gmra.mrb[0].mxu0 %v936
    %v938 = vpop.f32.mrb[0].mxu0
    %v939 = vadd.f32 %v853, %v938
    %v940 = vpop.f32.mrb[0].mxu0
    %941 = vmatprep.mubr.f32.mxu0 0.0
    %v942 = vand.u32 %v674, 4294901760
    %v943 = vsub.f32 %v674, %v942
    %944 = vmatmul.mubr.f32.gmra.mrb[0].mxu0 %v943
    %v945 = vpop.f32.mrb[0].mxu0
    %v946 = vadd.f32 %v859, %v945
    %v947 = vpop.f32.mrb[0].mxu0
    %948 = vdwg.mxu0
    %949 = vmatprep.subr.mxu0 0.0
    %v950 = vand.u32 %v659, 4294901760
    %951 = vmatpush1.msra.mxu0 %v950
    %952 = vmatprep.subr.mxu0 0.0
    %v953 = vand.u32 %v660, 4294901760
    %954 = vmatpush1.msra.mxu0 %v953
    %955 = vmatprep.subr.mxu0 0.0
    %v956 = vand.u32 %v661, 4294901760
    %957 = vmatpush1.msra.mxu0 %v956
    %958 = vmatprep.subr.mxu0 0.0
    %v959 = vand.u32 %v662, 4294901760
    %960 = vmatpush1.msra.mxu0 %v959
    %961 = vmatprep.subr.mxu0 0.0
    %962 = vmatpush1.msra.mxu0 0.0
    %963 = vmatprep.subr.mxu0 0.0
    %964 = vmatpush1.msra.mxu0 0.0
    %965 = vmatprep.subr.mxu0 0.0
    %966 = vmatpush1.msra.mxu0 0.0
    %967 = vmatprep.subr.mxu0 0.0
    %968 = vmatpush1.msra.mxu0 0.0
    %969 = vmatprep.subr.mxu0 0.0
    %970 = vmatpush1.msra.mxu0 0.0
    %971 = vmatprep.subr.mxu0 0.0
    %972 = vmatpush1.msra.mxu0 0.0
    %973 = vmatprep.subr.mxu0 0.0
    %974 = vmatpush1.msra.mxu0 0.0
    %975 = vmatprep.subr.mxu0 0.0
    %976 = vmatpush1.msra.mxu0 0.0
    %977 = vmatprep.subr.mxu0 0.0
    %978 = vmatpush1.msra.mxu0 0.0
    %979 = vmatprep.subr.mxu0 0.0
    %980 = vmatpush1.msra.mxu0 0.0
    %981 = vmatprep.subr.mxu0 0.0
    %982 = vmatpush1.msra.mxu0 0.0
    %983 = vmatprep.subr.mxu0 0.0
    %984 = vmatpush1.msra.mxu0 0.0
    %985 = vmatprep.subr.mxu0 0.0
    %986 = vmatpush1.msra.mxu0 0.0
    %987 = vmatprep.subr.mxu0 0.0
    %988 = vmatpush1.msra.mxu0 0.0
    %989 = vmatprep.subr.mxu0 0.0
    %990 = vmatpush1.msra.mxu0 0.0
    %991 = vmatprep.subr.mxu0 0.0
    %992 = vmatpush1.msra.mxu0 0.0
    %993 = vmatprep.subr.mxu0 0.0
    %994 = vmatpush1.msra.mxu0 0.0
    %995 = vmatprep.subr.mxu0 0.0
    %996 = vmatpush1.msra.mxu0 0.0
    %997 = vmatprep.subr.mxu0 0.0
    %998 = vmatpush1.msra.mxu0 0.0
    %999 = vmatprep.subr.mxu0 0.0
    %1000 = vmatpush1.msra.mxu0 0.0
    %1001 = vmatprep.subr.mxu0 0.0
    %1002 = vmatpush1.msra.mxu0 0.0
    %1003 = vmatprep.subr.mxu0 0.0
    %1004 = vmatpush1.msra.mxu0 0.0
    %1005 = vmatprep.subr.mxu0 0.0
    %1006 = vmatpush1.msra.mxu0 0.0
    %1007 = vmatprep.subr.mxu0 0.0
    %1008 = vmatpush1.msra.mxu0 0.0
    %1009 = vmatprep.subr.mxu0 0.0
    %1010 = vmatpush1.msra.mxu0 0.0
    %1011 = vmatprep.subr.mxu0 0.0
    %1012 = vmatpush1.msra.mxu0 0.0
    %1013 = vmatprep.subr.mxu0 0.0
    %1014 = vmatpush1.msra.mxu0 0.0
    %1015 = vmatprep.subr.mxu0 0.0
    %1016 = vmatpush1.msra.mxu0 0.0
    %1017 = vmatprep.mubr.f32.mxu0 0.0
    %v1018 = vand.u32 %v671, 4294901760
    %v1019 = vsub.f32 %v671, %v1018
    %v1020 = vand.u32 %v1019, 4294901760
    %1021 = vmatmul.mubr.f32.gmra.mrb[0].mxu0 %v1020
    %v1022 = vpop.f32.mrb[0].mxu0
    %v1023 = vadd.f32 %v939, %v1022
    %v1024 = vpop.f32.mrb[0].mxu0
    %1025 = vmatprep.mubr.f32.mxu0 0.0
    %v1026 = vand.u32 %v674, 4294901760
    %v1027 = vsub.f32 %v674, %v1026
    %v1028 = vand.u32 %v1027, 4294901760
    %1029 = vmatmul.mubr.f32.gmra.mrb[0].mxu0 %v1028
    %v1030 = vpop.f32.mrb[0].mxu0
    %v1031 = vadd.f32 %v946, %v1030
    %v1032 = vpop.f32.mrb[0].mxu0
    %1033 = vdwg.mxu0
    %1034 = vmatprep.subr.mxu0 0.0
    %v1035 = vand.u32 %v659, 4294901760
    %v1036 = vsub.f32 %v659, %v1035
    %v1037 = vand.u32 %v1036, 4294901760
    %1038 = vmatpush1.msra.mxu0 %v1037
    %1039 = vmatprep.subr.mxu0 0.0
    %v1040 = vand.u32 %v660, 4294901760
    %v1041 = vsub.f32 %v660, %v1040
    %v1042 = vand.u32 %v1041, 4294901760
    %1043 = vmatpush1.msra.mxu0 %v1042
    %1044 = vmatprep.subr.mxu0 0.0
    %v1045 = vand.u32 %v661, 4294901760
    %v1046 = vsub.f32 %v661, %v1045
    %v1047 = vand.u32 %v1046, 4294901760
    %1048 = vmatpush1.msra.mxu0 %v1047
    %1049 = vmatprep.subr.mxu0 0.0
    %v1050 = vand.u32 %v662, 4294901760
    %v1051 = vsub.f32 %v662, %v1050
    %v1052 = vand.u32 %v1051, 4294901760
    %1053 = vmatpush1.msra.mxu0 %v1052
    %1054 = vmatprep.subr.mxu0 0.0
    %1055 = vmatpush1.msra.mxu0 0.0
    %1056 = vmatprep.subr.mxu0 0.0
    %1057 = vmatpush1.msra.mxu0 0.0
    %1058 = vmatprep.subr.mxu0 0.0
    %1059 = vmatpush1.msra.mxu0 0.0
    %1060 = vmatprep.subr.mxu0 0.0
    %1061 = vmatpush1.msra.mxu0 0.0
    %1062 = vmatprep.subr.mxu0 0.0
    %1063 = vmatpush1.msra.mxu0 0.0
    %1064 = vmatprep.subr.mxu0 0.0
    %1065 = vmatpush1.msra.mxu0 0.0
    %1066 = vmatprep.subr.mxu0 0.0
    %1067 = vmatpush1.msra.mxu0 0.0
    %1068 = vmatprep.subr.mxu0 0.0
    %1069 = vmatpush1.msra.mxu0 0.0
    %1070 = vmatprep.subr.mxu0 0.0
    %1071 = vmatpush1.msra.mxu0 0.0
    %1072 = vmatprep.subr.mxu0 0.0
    %1073 = vmatpush1.msra.mxu0 0.0
    %1074 = vmatprep.subr.mxu0 0.0
    %1075 = vmatpush1.msra.mxu0 0.0
    %1076 = vmatprep.subr.mxu0 0.0
    %1077 = vmatpush1.msra.mxu0 0.0
    %1078 = vmatprep.subr.mxu0 0.0
    %1079 = vmatpush1.msra.mxu0 0.0
    %1080 = vmatprep.subr.mxu0 0.0
    %1081 = vmatpush1.msra.mxu0 0.0
    %1082 = vmatprep.subr.mxu0 0.0
    %1083 = vmatpush1.msra.mxu0 0.0
    %1084 = vmatprep.subr.mxu0 0.0
    %1085 = vmatpush1.msra.mxu0 0.0
    %1086 = vmatprep.subr.mxu0 0.0
    %1087 = vmatpush1.msra.mxu0 0.0
    %1088 = vmatprep.subr.mxu0 0.0
    %1089 = vmatpush1.msra.mxu0 0.0
    %1090 = vmatprep.subr.mxu0 0.0
    %1091 = vmatpush1.msra.mxu0 0.0
    %1092 = vmatprep.subr.mxu0 0.0
    %1093 = vmatpush1.msra.mxu0 0.0
    %1094 = vmatprep.subr.mxu0 0.0
    %1095 = vmatpush1.msra.mxu0 0.0
    %1096 = vmatprep.subr.mxu0 0.0
    %1097 = vmatpush1.msra.mxu0 0.0
    %1098 = vmatprep.subr.mxu0 0.0
    %1099 = vmatpush1.msra.mxu0 0.0
    %1100 = vmatprep.subr.mxu0 0.0
    %1101 = vmatpush1.msra.mxu0 0.0
    %1102 = vmatprep.subr.mxu0 0.0
    %1103 = vmatpush1.msra.mxu0 0.0
    %1104 = vmatprep.subr.mxu0 0.0
    %1105 = vmatpush1.msra.mxu0 0.0
    %1106 = vmatprep.subr.mxu0 0.0
    %1107 = vmatpush1.msra.mxu0 0.0
    %1108 = vmatprep.subr.mxu0 0.0
    %1109 = vmatpush1.msra.mxu0 0.0
    %1110 = vmatprep.mubr.f32.mxu0 0.0
    %v1111 = vand.u32 %v671, 4294901760
    %1112 = vmatmul.mubr.f32.gmra.mrb[0].mxu0 %v1111
    %v1113 = vpop.f32.mrb[0].mxu0
    %v1114 = vadd.f32 %v1023, %v1113
    %v1115 = vpop.f32.mrb[0].mxu0
    %1116 = vmatprep.mubr.f32.mxu0 0.0
    %v1117 = vand.u32 %v674, 4294901760
    %1118 = vmatmul.mubr.f32.gmra.mrb[0].mxu0 %v1117
    %v1119 = vpop.f32.mrb[0].mxu0
    %v1120 = vadd.f32 %v1031, %v1119
    %v1121 = vpop.f32.mrb[0].mxu0
    %1122 = vdwg.mxu0
    %1123 = vmatprep.subr.mxu0 0.0
    %v1124 = vand.u32 %v659, 4294901760
    %1125 = vmatpush1.msra.mxu0 %v1124
    %1126 = vmatprep.subr.mxu0 0.0
    %v1127 = vand.u32 %v660, 4294901760
    %1128 = vmatpush1.msra.mxu0 %v1127
    %1129 = vmatprep.subr.mxu0 0.0
    %v1130 = vand.u32 %v661, 4294901760
    %1131 = vmatpush1.msra.mxu0 %v1130
    %1132 = vmatprep.subr.mxu0 0.0
    %v1133 = vand.u32 %v662, 4294901760
    %1134 = vmatpush1.msra.mxu0 %v1133
    %1135 = vmatprep.subr.mxu0 0.0
    %1136 = vmatpush1.msra.mxu0 0.0
    %1137 = vmatprep.subr.mxu0 0.0
    %1138 = vmatpush1.msra.mxu0 0.0
    %1139 = vmatprep.subr.mxu0 0.0
    %1140 = vmatpush1.msra.mxu0 0.0
    %1141 = vmatprep.subr.mxu0 0.0
    %1142 = vmatpush1.msra.mxu0 0.0
    %1143 = vmatprep.subr.mxu0 0.0
    %1144 = vmatpush1.msra.mxu0 0.0
    %1145 = vmatprep.subr.mxu0 0.0
    %1146 = vmatpush1.msra.mxu0 0.0
    %1147 = vmatprep.subr.mxu0 0.0
    %1148 = vmatpush1.msra.mxu0 0.0
    %1149 = vmatprep.subr.mxu0 0.0
    %1150 = vmatpush1.msra.mxu0 0.0
    %1151 = vmatprep.subr.mxu0 0.0
    %1152 = vmatpush1.msra.mxu0 0.0
    %1153 = vmatprep.subr.mxu0 0.0
    %1154 = vmatpush1.msra.mxu0 0.0
    %1155 = vmatprep.subr.mxu0 0.0
    %1156 = vmatpush1.msra.mxu0 0.0
    %1157 = vmatprep.subr.mxu0 0.0
    %1158 = vmatpush1.msra.mxu0 0.0
    %1159 = vmatprep.subr.mxu0 0.0
    %1160 = vmatpush1.msra.mxu0 0.0
    %1161 = vmatprep.subr.mxu0 0.0
    %1162 = vmatpush1.msra.mxu0 0.0
    %1163 = vmatprep.subr.mxu0 0.0
    %1164 = vmatpush1.msra.mxu0 0.0
    %1165 = vmatprep.subr.mxu0 0.0
    %1166 = vmatpush1.msra.mxu0 0.0
    %1167 = vmatprep.subr.mxu0 0.0
    %1168 = vmatpush1.msra.mxu0 0.0
    %1169 = vmatprep.subr.mxu0 0.0
    %1170 = vmatpush1.msra.mxu0 0.0
    %1171 = vmatprep.subr.mxu0 0.0
    %1172 = vmatpush1.msra.mxu0 0.0
    %1173 = vmatprep.subr.mxu0 0.0
    %1174 = vmatpush1.msra.mxu0 0.0
    %1175 = vmatprep.subr.mxu0 0.0
    %1176 = vmatpush1.msra.mxu0 0.0
    %1177 = vmatprep.subr.mxu0 0.0
    %1178 = vmatpush1.msra.mxu0 0.0
    %1179 = vmatprep.subr.mxu0 0.0
    %1180 = vmatpush1.msra.mxu0 0.0
    %1181 = vmatprep.subr.mxu0 0.0
    %1182 = vmatpush1.msra.mxu0 0.0
    %1183 = vmatprep.subr.mxu0 0.0
    %1184 = vmatpush1.msra.mxu0 0.0
    %1185 = vmatprep.subr.mxu0 0.0
    %1186 = vmatpush1.msra.mxu0 0.0
    %1187 = vmatprep.subr.mxu0 0.0
    %1188 = vmatpush1.msra.mxu0 0.0
    %1189 = vmatprep.subr.mxu0 0.0
    %1190 = vmatpush1.msra.mxu0 0.0
    %1191 = vmatprep.mubr.f32.mxu0 0.0
    %v1192 = vand.u32 %v671, 4294901760
    %1193 = vmatmul.mubr.f32.gmra.mrb[0].mxu0 %v1192
    %v1194 = vpop.f32.mrb[0].mxu0
    %v1195 = vadd.f32 %v1114, %v1194
    %v1196 = vpop.f32.mrb[0].mxu0
    %1197 = vmatprep.mubr.f32.mxu0 0.0
    %v1198 = vand.u32 %v674, 4294901760
    %1199 = vmatmul.mubr.f32.gmra.mrb[0].mxu0 %v1198
    %v1200 = vpop.f32.mrb[0].mxu0
    %v1201 = vadd.f32 %v1120, %v1200
    %v1202 = vpop.f32.mrb[0].mxu0
    %1203 = vdwg.mxu0
    %1204 = vst.msk [vmem:[#allocation8] sm:$0xff] %vm106, %v1195
    %1205 = vst.msk [vmem:[#allocation8 + $0x8] sm:$0xff] %vm106, %v1201
    // Predicated region
    $region42: #{tpu_custom_call.1} parent=1 // pred_check
      _
    $region43: #{tpu_custom_call.1} parent=1 // pred_check_branch
      %1207 = sbr.rel (0) target = $region45
    $region44: #{tpu_custom_call.1} parent=1 // pred_region
      %s1209 = ssub.s32 256, 256
      %1210 = vsyncadd [#allocation4], %s1209
      %s1211 = sshll.u32 [#allocation8], 4
      %s1212 = int_to_ptr.vmem [resolvable:$true] %s1211
      %1217 = dma.vmem_to_hbm [thread:$0]  %s1212, 256, %s7, [#allocation4], 128, 128, 8
    $region45: #{tpu_custom_call.1} parent=1 // pred_fallthru
      _
    // Predicated region
    $region46: #{tpu_custom_call.1} parent=1 // pred_check
      _
    $region47: #{tpu_custom_call.1} parent=1 // pred_check_branch
      %1219 = sbr.rel (0) target = $region49
    $region48: #{tpu_custom_call.1} parent=1 // pred_region
      %1220 = dma.done [#allocation4], 256
    $region49: #{tpu_custom_call.1} parent=1 // pred_fallthru
      _
    %1221 = vsyncpa [#allocation3], 1
    %1222 = vsyncpa [#allocation6], 1
    %1223 = vsyncpa [#allocation4], 1

// kernel: tpu_custom_call.1
$region0: #{tpu_custom_call.1}
  #allocation0 [shape = 'u32[]', space=smem, size = 0x4, offset = 0x4, fixed_abs, tag = 'smem constant byte address 0x4 - core index']
  #allocation1 [shape = 'u32[144,128]{1,0:T(1,128)}', space=vmem, size = 0x12000, scoped, tag = 'internal scratch']
  %s0 = inlined_call_operand.vmem [shape: f32[2,1,1], index: 0, kind: input, shape index: {}]
  %s1 = inlined_call_operand.hbm [shape: f32[2,8,32], index: 1, kind: input, shape index: {}]
  %s2 = inlined_call_operand.vmem [shape: f32[8,32], index: 2, kind: input, shape index: {}]
  %s3 = inlined_call_operand.hbm [shape: f32[32,32], index: 3, kind: input, shape index: {}]
  %s4 = inlined_call_operand.vmem [shape: f32[1,32], index: 4, kind: input, shape index: {}]
  %s5 = inlined_call_operand.hbm [shape: f32[32,32], index: 5, kind: input, shape index: {}]
  %s6 = inlined_call_operand.vmem [shape: f32[1,32], index: 6, kind: input, shape index: {}]
  %s7 = inlined_call_operand.hbm [shape: f32[2,8,32], index: 7, kind: output, shape index: {}]
  %s8 = sld [smem:[#allocation0]]
  $region50: #{tpu_custom_call.1} parent=0
    _
  %s10 = ssub.s32 1, %s8
  %s11 = scalar_select 0, %s10, %s8
  $region1: #{tpu_custom_call.1} parent=0
    #allocation2 [shape = 'u8[8192]{0}', space=vmem, size = 0x2000, scoped, tag = 'input window, operand 1, single buffered']
    #allocation3 [shape = 's32[1]{0}', space=sflag, size = 0x4, scoped, tag = 'scoped memory for tpu_custom_call.1']
    #allocation4 [shape = 's32[1]{0}', space=sflag, size = 0x4, scoped, tag = 'scoped memory for tpu_custom_call.1']
    #allocation5 [shape = 'u8[16384]{0}', space=vmem, size = 0x4000, scoped, tag = 'input window, operand 3, single buffered']
    #allocation6 [shape = 's32[1]{0}', space=sflag, size = 0x4, scoped, tag = 'scoped memory for tpu_custom_call.1']
    #allocation7 [shape = 'u8[16384]{0}', space=vmem, size = 0x4000, scoped, tag = 'input window, operand 5, single buffered']
    #allocation8 [shape = 'u8[8192]{0}', space=vmem, size = 0x2000, scoped, tag = 'output window, operand 0, single buffered']
    %12 = vsyncpa [#allocation3], 0
    %13 = vsyncpa [#allocation6], 0
    %14 = vsyncpa [#allocation4], 0
    // Predicated region
    $region2: #{tpu_custom_call.1} parent=1 // pred_check
      _
    $region3: #{tpu_custom_call.1} parent=1 // pred_check_branch
      %16 = sbr.rel (0) target = $region5
    $region4: #{tpu_custom_call.1} parent=1 // pred_region
      _
    $region5: #{tpu_custom_call.1} parent=1 // pred_fallthru
      _
    // Predicated region
    $region6: #{tpu_custom_call.1} parent=1 // pred_check
      _
    $region7: #{tpu_custom_call.1} parent=1 // pred_check_branch
      %18 = sbr.rel (0) target = $region9
    $region8: #{tpu_custom_call.1} parent=1 // pred_region
      %s20 = ssub.s32 256, 256
      %21 = vsyncadd [#allocation3], %s20
      %s22 = sshll.u32 [#allocation2], 4
      %s23 = int_to_ptr.vmem [resolvable:$true] %s22
      %28 = dma.hbm_to_vmem [thread:$0]  %s1, 256, %s23, [#allocation3], 128, 128, 8
    $region9: #{tpu_custom_call.1} parent=1 // pred_fallthru
      _
    // Predicated region
    $region10: #{tpu_custom_call.1} parent=1 // pred_check
      _
    $region11: #{tpu_custom_call.1} parent=1 // pred_check_branch
      %30 = sbr.rel (0) target = $region13
    $region12: #{tpu_custom_call.1} parent=1 // pred_region
      _
    $region13: #{tpu_custom_call.1} parent=1 // pred_fallthru
      _
    // Predicated region
    $region14: #{tpu_custom_call.1} parent=1 // pred_check
      _
    $region15: #{tpu_custom_call.1} parent=1 // pred_check_branch
      %32 = sbr.rel (0) target = $region17
    $region16: #{tpu_custom_call.1} parent=1 // pred_region
      %s34 = ssub.s32 512, 512
      %35 = vsyncadd [#allocation6], %s34
      %s36 = sshll.u32 [#allocation5], 4
      %s37 = int_to_ptr.vmem [resolvable:$true] %s36
      %42 = dma.hbm_to_vmem [thread:$0]  %s3, 512, %s37, [#allocation6], 128, 128, 8
    $region17: #{tpu_custom_call.1} parent=1 // pred_fallthru
      _
    // Predicated region
    $region18: #{tpu_custom_call.1} parent=1 // pred_check
      _
    $region19: #{tpu_custom_call.1} parent=1 // pred_check_branch
      %44 = sbr.rel (0) target = $region21
    $region20: #{tpu_custom_call.1} parent=1 // pred_region
      _
    $region21: #{tpu_custom_call.1} parent=1 // pred_fallthru
      _
    // Predicated region
    $region22: #{tpu_custom_call.1} parent=1 // pred_check
      _
    $region23: #{tpu_custom_call.1} parent=1 // pred_check_branch
      %46 = sbr.rel (0) target = $region25
    $region24: #{tpu_custom_call.1} parent=1 // pred_region
      %s48 = ssub.s32 512, 512
      %49 = vsyncadd [#allocation6], %s48
      %s50 = sshll.u32 [#allocation7], 4
      %s51 = int_to_ptr.vmem [resolvable:$true] %s50
      %56 = dma.hbm_to_vmem [thread:$0]  %s5, 512, %s51, [#allocation6], 128, 128, 8
    $region25: #{tpu_custom_call.1} parent=1 // pred_fallthru
      _
    // Predicated region
    $region26: #{tpu_custom_call.1} parent=1 // pred_check
      _
    $region27: #{tpu_custom_call.1} parent=1 // pred_check_branch
      %58 = sbr.rel (0) target = $region29
    $region28: #{tpu_custom_call.1} parent=1 // pred_region
      _
    $region29: #{tpu_custom_call.1} parent=1 // pred_fallthru
      _
    // Predicated region
    $region30: #{tpu_custom_call.1} parent=1 // pred_check
      _
    $region31: #{tpu_custom_call.1} parent=1 // pred_check_branch
      %60 = sbr.rel (0) target = $region33
    $region32: #{tpu_custom_call.1} parent=1 // pred_region
      %61 = dma.done [#allocation3], 256
    $region33: #{tpu_custom_call.1} parent=1 // pred_fallthru
      _
    // Predicated region
    $region34: #{tpu_custom_call.1} parent=1 // pred_check
      _
    $region35: #{tpu_custom_call.1} parent=1 // pred_check_branch
      %63 = sbr.rel (0) target = $region37
    $region36: #{tpu_custom_call.1} parent=1 // pred_region
      %64 = dma.done [#allocation6], 512
    $region37: #{tpu_custom_call.1} parent=1 // pred_fallthru
      _
    // Predicated region
    $region38: #{tpu_custom_call.1} parent=1 // pred_check
      _
    $region39: #{tpu_custom_call.1} parent=1 // pred_check_branch
      %66 = sbr.rel (0) target = $region41
    $region40: #{tpu_custom_call.1} parent=1 // pred_region
      %67 = dma.done [#allocation6], 512
    $region41: #{tpu_custom_call.1} parent=1 // pred_fallthru
      _
    %v68 = vld [vmem:[%s0] sm:$0x1]
    %v69 = vld [vmem:[%s0 + $0x1] sm:$0x1]
    %vm70 = vcmp.gt.f32.partialorder %v68, 0.5
    %vm71 = vcmp.gt.f32.partialorder %v69, 0.5
    %v72 = vld [vmem:[%s2] sm:$0xff]
    %v73 = vld [vmem:[#allocation2] sm:$0xff]
    %v74 = vld [vmem:[#allocation2 + $0x8] sm:$0xff]
    %v75 = vsel %vm70, 1, 0
    %v76 = vsel %vm71, 1, 0
    %v77 = vlaneseq
    %v78 = vshrl.u32 %v77, 7
    %v79 = vsub.s32 0, %v78
    %v80 = vrot.slane %v75, %v79
    %v81 = vlaneseq
    %v82 = vshrl.u32 %v81, 7
    %v83 = vsub.s32 0, %v82
    %v84 = vrot.slane %v76, %v83
    %85 = vset.pattern.permute.xlu0 0
    %86 = vperm.xlu0 %85, %v80
    %v87 = vpop.permute.xlu0 %86
    %88 = vset.pattern.permute.xlu0 0
    %89 = vperm.xlu0 %88, %v84
    %v90 = vpop.permute.xlu0 %89
    %vm91 = vcmp.eq.s32.totalorder %v87, 1
    %vm92 = vcmp.eq.s32.totalorder %v90, 1
    %v93 = vsel %vm91, %v72, %v73
    %v94 = vsel %vm92, %v72, %v74
    %v95 = vld [vmem:[#allocation5] sm:$0xff]
    %v96 = vld [vmem:[#allocation5 + $0x8] sm:$0xff]
    %v97 = vld [vmem:[#allocation5 + $0x10] sm:$0xff]
    %v98 = vld [vmem:[#allocation5 + $0x18] sm:$0xff]
    %v99 = vld [vmem:[%s4] sm:$0x1]
    %v101 = vlaneseq
    %v102 = vshrl.u32 %v101, 7
    %v103 = vsub.s32 0, %v102
    %v104 = vrot.slane %v99, %v103
    %vm106 = vcmask 261120
    %v108 = vsel %vm106, %v93, 0
    %v111 = vsel %vm106, %v94, 0
    %113 = vmatprep.subr.mxu0 0.0
    %v114 = vand.u32 %v95, 4294901760
    %115 = vmatpush1.msra.mxu0 %v114
    %116 = vmatprep.subr.mxu0 0.0
    %v117 = vand.u32 %v96, 4294901760
    %118 = vmatpush1.msra.mxu0 %v117
    %119 = vmatprep.subr.mxu0 0.0
    %v120 = vand.u32 %v97, 4294901760
    %121 = vmatpush1.msra.mxu0 %v120
    %122 = vmatprep.subr.mxu0 0.0
    %v123 = vand.u32 %v98, 4294901760
    %124 = vmatpush1.msra.mxu0 %v123
    %125 = vmatprep.subr.mxu0 0.0
    %126 = vmatpush1.msra.mxu0 0.0
    %127 = vmatprep.subr.mxu0 0.0
    %128 = vmatpush1.msra.mxu0 0.0
    %129 = vmatprep.subr.mxu0 0.0
    %130 = vmatpush1.msra.mxu0 0.0
    %131 = vmatprep.subr.mxu0 0.0
    %132 = vmatpush1.msra.mxu0 0.0
    %133 = vmatprep.subr.mxu0 0.0
    %134 = vmatpush1.msra.mxu0 0.0
    %135 = vmatprep.subr.mxu0 0.0
    %136 = vmatpush1.msra.mxu0 0.0
    %137 = vmatprep.subr.mxu0 0.0
    %138 = vmatpush1.msra.mxu0 0.0
    %139 = vmatprep.subr.mxu0 0.0
    %140 = vmatpush1.msra.mxu0 0.0
    %141 = vmatprep.subr.mxu0 0.0
    %142 = vmatpush1.msra.mxu0 0.0
    %143 = vmatprep.subr.mxu0 0.0
    %144 = vmatpush1.msra.mxu0 0.0
    %145 = vmatprep.subr.mxu0 0.0
    %146 = vmatpush1.msra.mxu0 0.0
    %147 = vmatprep.subr.mxu0 0.0
    %148 = vmatpush1.msra.mxu0 0.0
    %149 = vmatprep.subr.mxu0 0.0
    %150 = vmatpush1.msra.mxu0 0.0
    %151 = vmatprep.subr.mxu0 0.0
    %152 = vmatpush1.msra.mxu0 0.0
    %153 = vmatprep.subr.mxu0 0.0
    %154 = vmatpush1.msra.mxu0 0.0
    %155 = vmatprep.subr.mxu0 0.0
    %156 = vmatpush1.msra.mxu0 0.0
    %157 = vmatprep.subr.mxu0 0.0
    %158 = vmatpush1.msra.mxu0 0.0
    %159 = vmatprep.subr.mxu0 0.0
    %160 = vmatpush1.msra.mxu0 0.0
    %161 = vmatprep.subr.mxu0 0.0
    %162 = vmatpush1.msra.mxu0 0.0
    %163 = vmatprep.subr.mxu0 0.0
    %164 = vmatpush1.msra.mxu0 0.0
    %165 = vmatprep.subr.mxu0 0.0
    %166 = vmatpush1.msra.mxu0 0.0
    %167 = vmatprep.subr.mxu0 0.0
    %168 = vmatpush1.msra.mxu0 0.0
    %169 = vmatprep.subr.mxu0 0.0
    %170 = vmatpush1.msra.mxu0 0.0
    %171 = vmatprep.subr.mxu0 0.0
    %172 = vmatpush1.msra.mxu0 0.0
    %173 = vmatprep.subr.mxu0 0.0
    %174 = vmatpush1.msra.mxu0 0.0
    %175 = vmatprep.subr.mxu0 0.0
    %176 = vmatpush1.msra.mxu0 0.0
    %177 = vmatprep.subr.mxu0 0.0
    %178 = vmatpush1.msra.mxu0 0.0
    %179 = vmatprep.subr.mxu0 0.0
    %180 = vmatpush1.msra.mxu0 0.0
    %181 = vmatprep.mubr.f32.mxu0 0.0
    %v182 = vand.u32 %v108, 4294901760
    %v183 = vsub.f32 %v108, %v182
    %v184 = vand.u32 %v183, 4294901760
    %v185 = vsub.f32 %v183, %v184
    %v186 = vand.u32 %v185, 4294901760
    %187 = vmatmul.mubr.f32.gmra.mrb[0].mxu0 %v186
    %v188 = vpop.f32.mrb[0].mxu0
    %v189 = vadd.f32 %v104, %v188
    %v190 = vpop.f32.mrb[0].mxu0
    %191 = vmatprep.mubr.f32.mxu0 0.0
    %v192 = vand.u32 %v111, 4294901760
    %v193 = vsub.f32 %v111, %v192
    %v194 = vand.u32 %v193, 4294901760
    %v195 = vsub.f32 %v193, %v194
    %v196 = vand.u32 %v195, 4294901760
    %197 = vmatmul.mubr.f32.gmra.mrb[0].mxu0 %v196
    %v198 = vpop.f32.mrb[0].mxu0
    %v199 = vadd.f32 %v104, %v198
    %v200 = vpop.f32.mrb[0].mxu0
    %201 = vdwg.mxu0
    %202 = vmatprep.subr.mxu0 0.0
    %v203 = vand.u32 %v95, 4294901760
    %v204 = vsub.f32 %v95, %v203
    %v205 = vand.u32 %v204, 4294901760
    %v206 = vsub.f32 %v204, %v205
    %v207 = vand.u32 %v206, 4294901760
    %208 = vmatpush1.msra.mxu0 %v207
    %209 = vmatprep.subr.mxu0 0.0
    %v210 = vand.u32 %v96, 4294901760
    %v211 = vsub.f32 %v96, %v210
    %v212 = vand.u32 %v211, 4294901760
    %v213 = vsub.f32 %v211, %v212
    %v214 = vand.u32 %v213, 4294901760
    %215 = vmatpush1.msra.mxu0 %v214
    %216 = vmatprep.subr.mxu0 0.0
    %v217 = vand.u32 %v97, 4294901760
    %v218 = vsub.f32 %v97, %v217
    %v219 = vand.u32 %v218, 4294901760
    %v220 = vsub.f32 %v218, %v219
    %v221 = vand.u32 %v220, 4294901760
    %222 = vmatpush1.msra.mxu0 %v221
    %223 = vmatprep.subr.mxu0 0.0
    %v224 = vand.u32 %v98, 4294901760
    %v225 = vsub.f32 %v98, %v224
    %v226 = vand.u32 %v225, 4294901760
    %v227 = vsub.f32 %v225, %v226
    %v228 = vand.u32 %v227, 4294901760
    %229 = vmatpush1.msra.mxu0 %v228
    %230 = vmatprep.subr.mxu0 0.0
    %231 = vmatpush1.msra.mxu0 0.0
    %232 = vmatprep.subr.mxu0 0.0
    %233 = vmatpush1.msra.mxu0 0.0
    %234 = vmatprep.subr.mxu0 0.0
    %235 = vmatpush1.msra.mxu0 0.0
    %236 = vmatprep.subr.mxu0 0.0
    %237 = vmatpush1.msra.mxu0 0.0
    %238 = vmatprep.subr.mxu0 0.0
    %239 = vmatpush1.msra.mxu0 0.0
    %240 = vmatprep.subr.mxu0 0.0
    %241 = vmatpush1.msra.mxu0 0.0
    %242 = vmatprep.subr.mxu0 0.0
    %243 = vmatpush1.msra.mxu0 0.0
    %244 = vmatprep.subr.mxu0 0.0
    %245 = vmatpush1.msra.mxu0 0.0
    %246 = vmatprep.subr.mxu0 0.0
    %247 = vmatpush1.msra.mxu0 0.0
    %248 = vmatprep.subr.mxu0 0.0
    %249 = vmatpush1.msra.mxu0 0.0
    %250 = vmatprep.subr.mxu0 0.0
    %251 = vmatpush1.msra.mxu0 0.0
    %252 = vmatprep.subr.mxu0 0.0
    %253 = vmatpush1.msra.mxu0 0.0
    %254 = vmatprep.subr.mxu0 0.0
    %255 = vmatpush1.msra.mxu0 0.0
    %256 = vmatprep.subr.mxu0 0.0
    %257 = vmatpush1.msra.mxu0 0.0
    %258 = vmatprep.subr.mxu0 0.0
    %259 = vmatpush1.msra.mxu0 0.0
    %260 = vmatprep.subr.mxu0 0.0
    %261 = vmatpush1.msra.mxu0 0.0
    %262 = vmatprep.subr.mxu0 0.0
    %263 = vmatpush1.msra.mxu0 0.0
    %264 = vmatprep.subr.mxu0 0.0
    %265 = vmatpush1.msra.mxu0 0.0
    %266 = vmatprep.subr.mxu0 0.0
    %267 = vmatpush1.msra.mxu0 0.0
    %268 = vmatprep.subr.mxu0 0.0
    %269 = vmatpush1.msra.mxu0 0.0
    %270 = vmatprep.subr.mxu0 0.0
    %271 = vmatpush1.msra.mxu0 0.0
    %272 = vmatprep.subr.mxu0 0.0
    %273 = vmatpush1.msra.mxu0 0.0
    %274 = vmatprep.subr.mxu0 0.0
    %275 = vmatpush1.msra.mxu0 0.0
    %276 = vmatprep.subr.mxu0 0.0
    %277 = vmatpush1.msra.mxu0 0.0
    %278 = vmatprep.subr.mxu0 0.0
    %279 = vmatpush1.msra.mxu0 0.0
    %280 = vmatprep.subr.mxu0 0.0
    %281 = vmatpush1.msra.mxu0 0.0
    %282 = vmatprep.subr.mxu0 0.0
    %283 = vmatpush1.msra.mxu0 0.0
    %284 = vmatprep.subr.mxu0 0.0
    %285 = vmatpush1.msra.mxu0 0.0
    %286 = vmatprep.mubr.f32.mxu0 0.0
    %v287 = vand.u32 %v108, 4294901760
    %288 = vmatmul.mubr.f32.gmra.mrb[0].mxu0 %v287
    %v289 = vpop.f32.mrb[0].mxu0
    %v290 = vadd.f32 %v189, %v289
    %v291 = vpop.f32.mrb[0].mxu0
    %292 = vmatprep.mubr.f32.mxu0 0.0
    %v293 = vand.u32 %v111, 4294901760
    %294 = vmatmul.mubr.f32.gmra.mrb[0].mxu0 %v293
    %v295 = vpop.f32.mrb[0].mxu0
    %v296 = vadd.f32 %v199, %v295
    %v297 = vpop.f32.mrb[0].mxu0
    %298 = vdwg.mxu0
    %299 = vmatprep.subr.mxu0 0.0
    %v300 = vand.u32 %v95, 4294901760
    %v301 = vsub.f32 %v95, %v300
    %302 = vmatpush1.msra.mxu0 %v301
    %303 = vmatprep.subr.mxu0 0.0
    %v304 = vand.u32 %v96, 4294901760
    %v305 = vsub.f32 %v96, %v304
    %306 = vmatpush1.msra.mxu0 %v305
    %307 = vmatprep.subr.mxu0 0.0
    %v308 = vand.u32 %v97, 4294901760
    %v309 = vsub.f32 %v97, %v308
    %310 = vmatpush1.msra.mxu0 %v309
    %311 = vmatprep.subr.mxu0 0.0
    %v312 = vand.u32 %v98, 4294901760
    %v313 = vsub.f32 %v98, %v312
    %314 = vmatpush1.msra.mxu0 %v313
    %315 = vmatprep.subr.mxu0 0.0
    %316 = vmatpush1.msra.mxu0 0.0
    %317 = vmatprep.subr.mxu0 0.0
    %318 = vmatpush1.msra.mxu0 0.0
    %319 = vmatprep.subr.mxu0 0.0
    %320 = vmatpush1.msra.mxu0 0.0
    %321 = vmatprep.subr.mxu0 0.0
    %322 = vmatpush1.msra.mxu0 0.0
    %323 = vmatprep.subr.mxu0 0.0
    %324 = vmatpush1.msra.mxu0 0.0
    %325 = vmatprep.subr.mxu0 0.0
    %326 = vmatpush1.msra.mxu0 0.0
    %327 = vmatprep.subr.mxu0 0.0
    %328 = vmatpush1.msra.mxu0 0.0
    %329 = vmatprep.subr.mxu0 0.0
    %330 = vmatpush1.msra.mxu0 0.0
    %331 = vmatprep.subr.mxu0 0.0
    %332 = vmatpush1.msra.mxu0 0.0
    %333 = vmatprep.subr.mxu0 0.0
    %334 = vmatpush1.msra.mxu0 0.0
    %335 = vmatprep.subr.mxu0 0.0
    %336 = vmatpush1.msra.mxu0 0.0
    %337 = vmatprep.subr.mxu0 0.0
    %338 = vmatpush1.msra.mxu0 0.0
    %339 = vmatprep.subr.mxu0 0.0
    %340 = vmatpush1.msra.mxu0 0.0
    %341 = vmatprep.subr.mxu0 0.0
    %342 = vmatpush1.msra.mxu0 0.0
    %343 = vmatprep.subr.mxu0 0.0
    %344 = vmatpush1.msra.mxu0 0.0
    %345 = vmatprep.subr.mxu0 0.0
    %346 = vmatpush1.msra.mxu0 0.0
    %347 = vmatprep.subr.mxu0 0.0
    %348 = vmatpush1.msra.mxu0 0.0
    %349 = vmatprep.subr.mxu0 0.0
    %350 = vmatpush1.msra.mxu0 0.0
    %351 = vmatprep.subr.mxu0 0.0
    %352 = vmatpush1.msra.mxu0 0.0
    %353 = vmatprep.subr.mxu0 0.0
    %354 = vmatpush1.msra.mxu0 0.0
    %355 = vmatprep.subr.mxu0 0.0
    %356 = vmatpush1.msra.mxu0 0.0
    %357 = vmatprep.subr.mxu0 0.0
    %358 = vmatpush1.msra.mxu0 0.0
    %359 = vmatprep.subr.mxu0 0.0
    %360 = vmatpush1.msra.mxu0 0.0
    %361 = vmatprep.subr.mxu0 0.0
    %362 = vmatpush1.msra.mxu0 0.0
    %363 = vmatprep.subr.mxu0 0.0
    %364 = vmatpush1.msra.mxu0 0.0
    %365 = vmatprep.subr.mxu0 0.0
    %366 = vmatpush1.msra.mxu0 0.0
    %367 = vmatprep.subr.mxu0 0.0
    %368 = vmatpush1.msra.mxu0 0.0
    %369 = vmatprep.subr.mxu0 0.0
    %370 = vmatpush1.msra.mxu0 0.0
    %371 = vmatprep.mubr.f32.mxu0 0.0
    %v372 = vand.u32 %v108, 4294901760
    %v373 = vsub.f32 %v108, %v372
    %374 = vmatmul.mubr.f32.gmra.mrb[0].mxu0 %v373
    %v375 = vpop.f32.mrb[0].mxu0
    %v376 = vadd.f32 %v290, %v375
    %v377 = vpop.f32.mrb[0].mxu0
    %378 = vmatprep.mubr.f32.mxu0 0.0
    %v379 = vand.u32 %v111, 4294901760
    %v380 = vsub.f32 %v111, %v379
    %381 = vmatmul.mubr.f32.gmra.mrb[0].mxu0 %v380
    %v382 = vpop.f32.mrb[0].mxu0
    %v383 = vadd.f32 %v296, %v382
    %v384 = vpop.f32.mrb[0].mxu0
    %385 = vdwg.mxu0
    %386 = vmatprep.subr.mxu0 0.0
    %v387 = vand.u32 %v95, 4294901760
    %388 = vmatpush1.msra.mxu0 %v387
    %389 = vmatprep.subr.mxu0 0.0
    %v390 = vand.u32 %v96, 4294901760
    %391 = vmatpush1.msra.mxu0 %v390
    %392 = vmatprep.subr.mxu0 0.0
    %v393 = vand.u32 %v97, 4294901760
    %394 = vmatpush1.msra.mxu0 %v393
    %395 = vmatprep.subr.mxu0 0.0
    %v396 = vand.u32 %v98, 4294901760
    %397 = vmatpush1.msra.mxu0 %v396
    %398 = vmatprep.subr.mxu0 0.0
    %399 = vmatpush1.msra.mxu0 0.0
    %400 = vmatprep.subr.mxu0 0.0
    %401 = vmatpush1.msra.mxu0 0.0
    %402 = vmatprep.subr.mxu0 0.0
    %403 = vmatpush1.msra.mxu0 0.0
    %404 = vmatprep.subr.mxu0 0.0
    %405 = vmatpush1.msra.mxu0 0.0
    %406 = vmatprep.subr.mxu0 0.0
    %407 = vmatpush1.msra.mxu0 0.0
    %408 = vmatprep.subr.mxu0 0.0
    %409 = vmatpush1.msra.mxu0 0.0
    %410 = vmatprep.subr.mxu0 0.0
    %411 = vmatpush1.msra.mxu0 0.0
    %412 = vmatprep.subr.mxu0 0.0
    %413 = vmatpush1.msra.mxu0 0.0
    %414 = vmatprep.subr.mxu0 0.0
    %415 = vmatpush1.msra.mxu0 0.0
    %416 = vmatprep.subr.mxu0 0.0
    %417 = vmatpush1.msra.mxu0 0.0
    %418 = vmatprep.subr.mxu0 0.0
    %419 = vmatpush1.msra.mxu0 0.0
    %420 = vmatprep.subr.mxu0 0.0
    %421 = vmatpush1.msra.mxu0 0.0
    %422 = vmatprep.subr.mxu0 0.0
    %423 = vmatpush1.msra.mxu0 0.0
    %424 = vmatprep.subr.mxu0 0.0
    %425 = vmatpush1.msra.mxu0 0.0
    %426 = vmatprep.subr.mxu0 0.0
    %427 = vmatpush1.msra.mxu0 0.0
    %428 = vmatprep.subr.mxu0 0.0
    %429 = vmatpush1.msra.mxu0 0.0
    %430 = vmatprep.subr.mxu0 0.0
    %431 = vmatpush1.msra.mxu0 0.0
    %432 = vmatprep.subr.mxu0 0.0
    %433 = vmatpush1.msra.mxu0 0.0
    %434 = vmatprep.subr.mxu0 0.0
    %435 = vmatpush1.msra.mxu0 0.0
    %436 = vmatprep.subr.mxu0 0.0
    %437 = vmatpush1.msra.mxu0 0.0
    %438 = vmatprep.subr.mxu0 0.0
    %439 = vmatpush1.msra.mxu0 0.0
    %440 = vmatprep.subr.mxu0 0.0
    %441 = vmatpush1.msra.mxu0 0.0
    %442 = vmatprep.subr.mxu0 0.0
    %443 = vmatpush1.msra.mxu0 0.0
    %444 = vmatprep.subr.mxu0 0.0
    %445 = vmatpush1.msra.mxu0 0.0
    %446 = vmatprep.subr.mxu0 0.0
    %447 = vmatpush1.msra.mxu0 0.0
    %448 = vmatprep.subr.mxu0 0.0
    %449 = vmatpush1.msra.mxu0 0.0
    %450 = vmatprep.subr.mxu0 0.0
    %451 = vmatpush1.msra.mxu0 0.0
    %452 = vmatprep.subr.mxu0 0.0
    %453 = vmatpush1.msra.mxu0 0.0
    %454 = vmatprep.mubr.f32.mxu0 0.0
    %v455 = vand.u32 %v108, 4294901760
    %v456 = vsub.f32 %v108, %v455
    %v457 = vand.u32 %v456, 4294901760
    %458 = vmatmul.mubr.f32.gmra.mrb[0].mxu0 %v457
    %v459 = vpop.f32.mrb[0].mxu0
    %v460 = vadd.f32 %v376, %v459
    %v461 = vpop.f32.mrb[0].mxu0
    %462 = vmatprep.mubr.f32.mxu0 0.0
    %v463 = vand.u32 %v111, 4294901760
    %v464 = vsub.f32 %v111, %v463
    %v465 = vand.u32 %v464, 4294901760
    %466 = vmatmul.mubr.f32.gmra.mrb[0].mxu0 %v465
    %v467 = vpop.f32.mrb[0].mxu0
    %v468 = vadd.f32 %v383, %v467
    %v469 = vpop.f32.mrb[0].mxu0
    %470 = vdwg.mxu0
    %471 = vmatprep.subr.mxu0 0.0
    %v472 = vand.u32 %v95, 4294901760
    %v473 = vsub.f32 %v95, %v472
    %v474 = vand.u32 %v473, 4294901760
    %475 = vmatpush1.msra.mxu0 %v474
    %476 = vmatprep.subr.mxu0 0.0
    %v477 = vand.u32 %v96, 4294901760
    %v478 = vsub.f32 %v96, %v477
    %v479 = vand.u32 %v478, 4294901760
    %480 = vmatpush1.msra.mxu0 %v479
    %481 = vmatprep.subr.mxu0 0.0
    %v482 = vand.u32 %v97, 4294901760
    %v483 = vsub.f32 %v97, %v482
    %v484 = vand.u32 %v483, 4294901760
    %485 = vmatpush1.msra.mxu0 %v484
    %486 = vmatprep.subr.mxu0 0.0
    %v487 = vand.u32 %v98, 4294901760
    %v488 = vsub.f32 %v98, %v487
    %v489 = vand.u32 %v488, 4294901760
    %490 = vmatpush1.msra.mxu0 %v489
    %491 = vmatprep.subr.mxu0 0.0
    %492 = vmatpush1.msra.mxu0 0.0
    %493 = vmatprep.subr.mxu0 0.0
    %494 = vmatpush1.msra.mxu0 0.0
    %495 = vmatprep.subr.mxu0 0.0
    %496 = vmatpush1.msra.mxu0 0.0
    %497 = vmatprep.subr.mxu0 0.0
    %498 = vmatpush1.msra.mxu0 0.0
    %499 = vmatprep.subr.mxu0 0.0
    %500 = vmatpush1.msra.mxu0 0.0
    %501 = vmatprep.subr.mxu0 0.0
    %502 = vmatpush1.msra.mxu0 0.0
    %503 = vmatprep.subr.mxu0 0.0
    %504 = vmatpush1.msra.mxu0 0.0
    %505 = vmatprep.subr.mxu0 0.0
    %506 = vmatpush1.msra.mxu0 0.0
    %507 = vmatprep.subr.mxu0 0.0
    %508 = vmatpush1.msra.mxu0 0.0
    %509 = vmatprep.subr.mxu0 0.0
    %510 = vmatpush1.msra.mxu0 0.0
    %511 = vmatprep.subr.mxu0 0.0
    %512 = vmatpush1.msra.mxu0 0.0
    %513 = vmatprep.subr.mxu0 0.0
    %514 = vmatpush1.msra.mxu0 0.0
    %515 = vmatprep.subr.mxu0 0.0
    %516 = vmatpush1.msra.mxu0 0.0
    %517 = vmatprep.subr.mxu0 0.0
    %518 = vmatpush1.msra.mxu0 0.0
    %519 = vmatprep.subr.mxu0 0.0
    %520 = vmatpush1.msra.mxu0 0.0
    %521 = vmatprep.subr.mxu0 0.0
    %522 = vmatpush1.msra.mxu0 0.0
    %523 = vmatprep.subr.mxu0 0.0
    %524 = vmatpush1.msra.mxu0 0.0
    %525 = vmatprep.subr.mxu0 0.0
    %526 = vmatpush1.msra.mxu0 0.0
    %527 = vmatprep.subr.mxu0 0.0
    %528 = vmatpush1.msra.mxu0 0.0
    %529 = vmatprep.subr.mxu0 0.0
    %530 = vmatpush1.msra.mxu0 0.0
    %531 = vmatprep.subr.mxu0 0.0
    %532 = vmatpush1.msra.mxu0 0.0
    %533 = vmatprep.subr.mxu0 0.0
    %534 = vmatpush1.msra.mxu0 0.0
    %535 = vmatprep.subr.mxu0 0.0
    %536 = vmatpush1.msra.mxu0 0.0
    %537 = vmatprep.subr.mxu0 0.0
    %538 = vmatpush1.msra.mxu0 0.0
    %539 = vmatprep.subr.mxu0 0.0
    %540 = vmatpush1.msra.mxu0 0.0
    %541 = vmatprep.subr.mxu0 0.0
    %542 = vmatpush1.msra.mxu0 0.0
    %543 = vmatprep.subr.mxu0 0.0
    %544 = vmatpush1.msra.mxu0 0.0
    %545 = vmatprep.subr.mxu0 0.0
    %546 = vmatpush1.msra.mxu0 0.0
    %547 = vmatprep.mubr.f32.mxu0 0.0
    %v548 = vand.u32 %v108, 4294901760
    %549 = vmatmul.mubr.f32.gmra.mrb[0].mxu0 %v548
    %v550 = vpop.f32.mrb[0].mxu0
    %v551 = vadd.f32 %v460, %v550
    %v552 = vpop.f32.mrb[0].mxu0
    %553 = vmatprep.mubr.f32.mxu0 0.0
    %v554 = vand.u32 %v111, 4294901760
    %555 = vmatmul.mubr.f32.gmra.mrb[0].mxu0 %v554
    %v556 = vpop.f32.mrb[0].mxu0
    %v557 = vadd.f32 %v468, %v556
    %v558 = vpop.f32.mrb[0].mxu0
    %559 = vdwg.mxu0
    %560 = vmatprep.subr.mxu0 0.0
    %v561 = vand.u32 %v95, 4294901760
    %562 = vmatpush1.msra.mxu0 %v561
    %563 = vmatprep.subr.mxu0 0.0
    %v564 = vand.u32 %v96, 4294901760
    %565 = vmatpush1.msra.mxu0 %v564
    %566 = vmatprep.subr.mxu0 0.0
    %v567 = vand.u32 %v97, 4294901760
    %568 = vmatpush1.msra.mxu0 %v567
    %569 = vmatprep.subr.mxu0 0.0
    %v570 = vand.u32 %v98, 4294901760
    %571 = vmatpush1.msra.mxu0 %v570
    %572 = vmatprep.subr.mxu0 0.0
    %573 = vmatpush1.msra.mxu0 0.0
    %574 = vmatprep.subr.mxu0 0.0
    %575 = vmatpush1.msra.mxu0 0.0
    %576 = vmatprep.subr.mxu0 0.0
    %577 = vmatpush1.msra.mxu0 0.0
    %578 = vmatprep.subr.mxu0 0.0
    %579 = vmatpush1.msra.mxu0 0.0
    %580 = vmatprep.subr.mxu0 0.0
    %581 = vmatpush1.msra.mxu0 0.0
    %582 = vmatprep.subr.mxu0 0.0
    %583 = vmatpush1.msra.mxu0 0.0
    %584 = vmatprep.subr.mxu0 0.0
    %585 = vmatpush1.msra.mxu0 0.0
    %586 = vmatprep.subr.mxu0 0.0
    %587 = vmatpush1.msra.mxu0 0.0
    %588 = vmatprep.subr.mxu0 0.0
    %589 = vmatpush1.msra.mxu0 0.0
    %590 = vmatprep.subr.mxu0 0.0
    %591 = vmatpush1.msra.mxu0 0.0
    %592 = vmatprep.subr.mxu0 0.0
    %593 = vmatpush1.msra.mxu0 0.0
    %594 = vmatprep.subr.mxu0 0.0
    %595 = vmatpush1.msra.mxu0 0.0
    %596 = vmatprep.subr.mxu0 0.0
    %597 = vmatpush1.msra.mxu0 0.0
    %598 = vmatprep.subr.mxu0 0.0
    %599 = vmatpush1.msra.mxu0 0.0
    %600 = vmatprep.subr.mxu0 0.0
    %601 = vmatpush1.msra.mxu0 0.0
    %602 = vmatprep.subr.mxu0 0.0
    %603 = vmatpush1.msra.mxu0 0.0
    %604 = vmatprep.subr.mxu0 0.0
    %605 = vmatpush1.msra.mxu0 0.0
    %606 = vmatprep.subr.mxu0 0.0
    %607 = vmatpush1.msra.mxu0 0.0
    %608 = vmatprep.subr.mxu0 0.0
    %609 = vmatpush1.msra.mxu0 0.0
    %610 = vmatprep.subr.mxu0 0.0
    %611 = vmatpush1.msra.mxu0 0.0
    %612 = vmatprep.subr.mxu0 0.0
    %613 = vmatpush1.msra.mxu0 0.0
    %614 = vmatprep.subr.mxu0 0.0
    %615 = vmatpush1.msra.mxu0 0.0
    %616 = vmatprep.subr.mxu0 0.0
    %617 = vmatpush1.msra.mxu0 0.0
    %618 = vmatprep.subr.mxu0 0.0
    %619 = vmatpush1.msra.mxu0 0.0
    %620 = vmatprep.subr.mxu0 0.0
    %621 = vmatpush1.msra.mxu0 0.0
    %622 = vmatprep.subr.mxu0 0.0
    %623 = vmatpush1.msra.mxu0 0.0
    %624 = vmatprep.subr.mxu0 0.0
    %625 = vmatpush1.msra.mxu0 0.0
    %626 = vmatprep.subr.mxu0 0.0
    %627 = vmatpush1.msra.mxu0 0.0
    %628 = vmatprep.mubr.f32.mxu0 0.0
    %v629 = vand.u32 %v108, 4294901760
    %630 = vmatmul.mubr.f32.gmra.mrb[0].mxu0 %v629
    %v631 = vpop.f32.mrb[0].mxu0
    %v632 = vadd.f32 %v551, %v631
    %v633 = vpop.f32.mrb[0].mxu0
    %634 = vmatprep.mubr.f32.mxu0 0.0
    %v635 = vand.u32 %v111, 4294901760
    %636 = vmatmul.mubr.f32.gmra.mrb[0].mxu0 %v635
    %v637 = vpop.f32.mrb[0].mxu0
    %v638 = vadd.f32 %v557, %v637
    %v639 = vpop.f32.mrb[0].mxu0
    %640 = vdwg.mxu0
    %v641 = vmul.f32 %v632, 0.5
    %v642 = vmul.f32 %v638, 0.5
    %v643 = vmul.f32 %v632, 0.044715
    %v644 = vmul.f32 %v638, 0.044715
    %v645 = vmul.f32 %v643, %v632
    %v646 = vmul.f32 %v644, %v638
    %v647 = vmul.f32 %v645, %v632
    %v648 = vmul.f32 %v646, %v638
    %v649 = vadd.f32 %v632, %v647
    %v650 = vadd.f32 %v638, %v648
    %v651 = vmul.f32 %v649, 0.7978846
    %v652 = vmul.f32 %v650, 0.7978846
    %v653 = vtanh.pop %v651
    %v654 = vtanh.pop %v652
    %v655 = vadd.f32 %v653, 1.0
    %v656 = vadd.f32 %v654, 1.0
    %v657 = vmul.f32 %v641, %v655
    %v658 = vmul.f32 %v642, %v656
    %v659 = vld [vmem:[#allocation7] sm:$0xff]
    %v660 = vld [vmem:[#allocation7 + $0x8] sm:$0xff]
    %v661 = vld [vmem:[#allocation7 + $0x10] sm:$0xff]
    %v662 = vld [vmem:[#allocation7 + $0x18] sm:$0xff]
    %v663 = vld [vmem:[%s6] sm:$0x1]
    %v665 = vlaneseq
    %v666 = vshrl.u32 %v665, 7
    %v667 = vsub.s32 0, %v666
    %v668 = vrot.slane %v663, %v667
    %v671 = vsel %vm106, %v657, 0
    %v674 = vsel %vm106, %v658, 0
    %676 = vmatprep.subr.mxu0 0.0
    %v677 = vand.u32 %v659, 4294901760
    %678 = vmatpush1.msra.mxu0 %v677
    %679 = vmatprep.subr.mxu0 0.0
    %v680 = vand.u32 %v660, 4294901760
    %681 = vmatpush1.msra.mxu0 %v680
    %682 = vmatprep.subr.mxu0 0.0
    %v683 = vand.u32 %v661, 4294901760
    %684 = vmatpush1.msra.mxu0 %v683
    %685 = vmatprep.subr.mxu0 0.0
    %v686 = vand.u32 %v662, 4294901760
    %687 = vmatpush1.msra.mxu0 %v686
    %688 = vmatprep.subr.mxu0 0.0
    %689 = vmatpush1.msra.mxu0 0.0
    %690 = vmatprep.subr.mxu0 0.0
    %691 = vmatpush1.msra.mxu0 0.0
    %692 = vmatprep.subr.mxu0 0.0
    %693 = vmatpush1.msra.mxu0 0.0
    %694 = vmatprep.subr.mxu0 0.0
    %695 = vmatpush1.msra.mxu0 0.0
    %696 = vmatprep.subr.mxu0 0.0
    %697 = vmatpush1.msra.mxu0 0.0
    %698 = vmatprep.subr.mxu0 0.0
    %699 = vmatpush1.msra.mxu0 0.0
    %700 = vmatprep.subr.mxu0 0.0
    %701 = vmatpush1.msra.mxu0 0.0
    %702 = vmatprep.subr.mxu0 0.0
    %703 = vmatpush1.msra.mxu0 0.0
    %704 = vmatprep.subr.mxu0 0.0
    %705 = vmatpush1.msra.mxu0 0.0
    %706 = vmatprep.subr.mxu0 0.0
    %707 = vmatpush1.msra.mxu0 0.0
    %708 = vmatprep.subr.mxu0 0.0
    %709 = vmatpush1.msra.mxu0 0.0
    %710 = vmatprep.subr.mxu0 0.0
    %711 = vmatpush1.msra.mxu0 0.0
    %712 = vmatprep.subr.mxu0 0.0
    %713 = vmatpush1.msra.mxu0 0.0
    %714 = vmatprep.subr.mxu0 0.0
    %715 = vmatpush1.msra.mxu0 0.0
    %716 = vmatprep.subr.mxu0 0.0
    %717 = vmatpush1.msra.mxu0 0.0
    %718 = vmatprep.subr.mxu0 0.0
    %719 = vmatpush1.msra.mxu0 0.0
    %720 = vmatprep.subr.mxu0 0.0
    %721 = vmatpush1.msra.mxu0 0.0
    %722 = vmatprep.subr.mxu0 0.0
    %723 = vmatpush1.msra.mxu0 0.0
    %724 = vmatprep.subr.mxu0 0.0
    %725 = vmatpush1.msra.mxu0 0.0
    %726 = vmatprep.subr.mxu0 0.0
    %727 = vmatpush1.msra.mxu0 0.0
    %728 = vmatprep.subr.mxu0 0.0
    %729 = vmatpush1.msra.mxu0 0.0
    %730 = vmatprep.subr.mxu0 0.0
    %731 = vmatpush1.msra.mxu0 0.0
    %732 = vmatprep.subr.mxu0 0.0
    %733 = vmatpush1.msra.mxu0 0.0
    %734 = vmatprep.subr.mxu0 0.0
    %735 = vmatpush1.msra.mxu0 0.0
    %736 = vmatprep.subr.mxu0 0.0
    %737 = vmatpush1.msra.mxu0 0.0
    %738 = vmatprep.subr.mxu0 0.0
    %739 = vmatpush1.msra.mxu0 0.0
    %740 = vmatprep.subr.mxu0 0.0
    %741 = vmatpush1.msra.mxu0 0.0
    %742 = vmatprep.subr.mxu0 0.0
    %743 = vmatpush1.msra.mxu0 0.0
    %744 = vmatprep.mubr.f32.mxu0 0.0
    %v745 = vand.u32 %v671, 4294901760
    %v746 = vsub.f32 %v671, %v745
    %v747 = vand.u32 %v746, 4294901760
    %v748 = vsub.f32 %v746, %v747
    %v749 = vand.u32 %v748, 4294901760
    %750 = vmatmul.mubr.f32.gmra.mrb[0].mxu0 %v749
    %v751 = vpop.f32.mrb[0].mxu0
    %v752 = vadd.f32 %v668, %v751
    %v753 = vpop.f32.mrb[0].mxu0
    %754 = vmatprep.mubr.f32.mxu0 0.0
    %v755 = vand.u32 %v674, 4294901760
    %v756 = vsub.f32 %v674, %v755
    %v757 = vand.u32 %v756, 4294901760
    %v758 = vsub.f32 %v756, %v757
    %v759 = vand.u32 %v758, 4294901760
    %760 = vmatmul.mubr.f32.gmra.mrb[0].mxu0 %v759
    %v761 = vpop.f32.mrb[0].mxu0
    %v762 = vadd.f32 %v668, %v761
    %v763 = vpop.f32.mrb[0].mxu0
    %764 = vdwg.mxu0
    %765 = vmatprep.subr.mxu0 0.0
    %v766 = vand.u32 %v659, 4294901760
    %v767 = vsub.f32 %v659, %v766
    %v768 = vand.u32 %v767, 4294901760
    %v769 = vsub.f32 %v767, %v768
    %v770 = vand.u32 %v769, 4294901760
    %771 = vmatpush1.msra.mxu0 %v770
    %772 = vmatprep.subr.mxu0 0.0
    %v773 = vand.u32 %v660, 4294901760
    %v774 = vsub.f32 %v660, %v773
    %v775 = vand.u32 %v774, 4294901760
    %v776 = vsub.f32 %v774, %v775
    %v777 = vand.u32 %v776, 4294901760
    %778 = vmatpush1.msra.mxu0 %v777
    %779 = vmatprep.subr.mxu0 0.0
    %v780 = vand.u32 %v661, 4294901760
    %v781 = vsub.f32 %v661, %v780
    %v782 = vand.u32 %v781, 4294901760
    %v783 = vsub.f32 %v781, %v782
    %v784 = vand.u32 %v783, 4294901760
    %785 = vmatpush1.msra.mxu0 %v784
    %786 = vmatprep.subr.mxu0 0.0
    %v787 = vand.u32 %v662, 4294901760
    %v788 = vsub.f32 %v662, %v787
    %v789 = vand.u32 %v788, 4294901760
    %v790 = vsub.f32 %v788, %v789
    %v791 = vand.u32 %v790, 4294901760
    %792 = vmatpush1.msra.mxu0 %v791
    %793 = vmatprep.subr.mxu0 0.0
    %794 = vmatpush1.msra.mxu0 0.0
    %795 = vmatprep.subr.mxu0 0.0
    %796 = vmatpush1.msra.mxu0 0.0
    %797 = vmatprep.subr.mxu0 0.0
    %798 = vmatpush1.msra.mxu0 0.0
    %799 = vmatprep.subr.mxu0 0.0
    %800 = vmatpush1.msra.mxu0 0.0
    %801 = vmatprep.subr.mxu0 0.0
    %802 = vmatpush1.msra.mxu0 0.0
    %803 = vmatprep.subr.mxu0 0.0
    %804 = vmatpush1.msra.mxu0 0.0
    %805 = vmatprep.subr.mxu0 0.0
    %806 = vmatpush1.msra.mxu0 0.0
    %807 = vmatprep.subr.mxu0 0.0
    %808 = vmatpush1.msra.mxu0 0.0
    %809 = vmatprep.subr.mxu0 0.0
    %810 = vmatpush1.msra.mxu0 0.0
    %811 = vmatprep.subr.mxu0 0.0
    %812 = vmatpush1.msra.mxu0 0.0
    %813 = vmatprep.subr.mxu0 0.0
    %814 = vmatpush1.msra.mxu0 0.0
    %815 = vmatprep.subr.mxu0 0.0
    %816 = vmatpush1.msra.mxu0 0.0
    %817 = vmatprep.subr.mxu0 0.0
    %818 = vmatpush1.msra.mxu0 0.0
    %819 = vmatprep.subr.mxu0 0.0
    %820 = vmatpush1.msra.mxu0 0.0
    %821 = vmatprep.subr.mxu0 0.0
    %822 = vmatpush1.msra.mxu0 0.0
    %823 = vmatprep.subr.mxu0 0.0
    %824 = vmatpush1.msra.mxu0 0.0
    %825 = vmatprep.subr.mxu0 0.0
    %826 = vmatpush1.msra.mxu0 0.0
    %827 = vmatprep.subr.mxu0 0.0
    %828 = vmatpush1.msra.mxu0 0.0
    %829 = vmatprep.subr.mxu0 0.0
    %830 = vmatpush1.msra.mxu0 0.0
    %831 = vmatprep.subr.mxu0 0.0
    %832 = vmatpush1.msra.mxu0 0.0
    %833 = vmatprep.subr.mxu0 0.0
    %834 = vmatpush1.msra.mxu0 0.0
    %835 = vmatprep.subr.mxu0 0.0
    %836 = vmatpush1.msra.mxu0 0.0
    %837 = vmatprep.subr.mxu0 0.0
    %838 = vmatpush1.msra.mxu0 0.0
    %839 = vmatprep.subr.mxu0 0.0
    %840 = vmatpush1.msra.mxu0 0.0
    %841 = vmatprep.subr.mxu0 0.0
    %842 = vmatpush1.msra.mxu0 0.0
    %843 = vmatprep.subr.mxu0 0.0
    %844 = vmatpush1.msra.mxu0 0.0
    %845 = vmatprep.subr.mxu0 0.0
    %846 = vmatpush1.msra.mxu0 0.0
    %847 = vmatprep.subr.mxu0 0.0
    %848 = vmatpush1.msra.mxu0 0.0
    %849 = vmatprep.mubr.f32.mxu0 0.0
    %v850 = vand.u32 %v671, 4294901760
    %851 = vmatmul.mubr.f32.gmra.mrb[0].mxu0 %v850
    %v852 = vpop.f32.mrb[0].mxu0
    %v853 = vadd.f32 %v752, %v852
    %v854 = vpop.f32.mrb[0].mxu0
    %855 = vmatprep.mubr.f32.mxu0 0.0
    %v856 = vand.u32 %v674, 4294901760
    %857 = vmatmul.mubr.f32.gmra.mrb[0].mxu0 %v856
    %v858 = vpop.f32.mrb[0].mxu0
    %v859 = vadd.f32 %v762, %v858
    %v860 = vpop.f32.mrb[0].mxu0
    %861 = vdwg.mxu0
    %862 = vmatprep.subr.mxu0 0.0
    %v863 = vand.u32 %v659, 4294901760
    %v864 = vsub.f32 %v659, %v863
    %865 = vmatpush1.msra.mxu0 %v864
    %866 = vmatprep.subr.mxu0 0.0
    %v867 = vand.u32 %v660, 4294901760
    %v868 = vsub.f32 %v660, %v867
    %869 = vmatpush1.msra.mxu0 %v868
    %870 = vmatprep.subr.mxu0 0.0
    %v871 = vand.u32 %v661, 4294901760
    %v872 = vsub.f32 %v661, %v871
    %873 = vmatpush1.msra.mxu0 %v872
    %874 = vmatprep.subr.mxu0 0.0
    %v875 = vand.u32 %v662, 4294901760
    %v876 = vsub.f32 %v662, %v875
    %877 = vmatpush1.msra.mxu0 %v876
    %878 = vmatprep.subr.mxu0 0.0
    %879 = vmatpush1.msra.mxu0 0.0
    %880 = vmatprep.subr.mxu0 0.0
    %881 = vmatpush1.msra.mxu0 0.0
    %882 = vmatprep.subr.mxu0 0.0
    %883 = vmatpush1.msra.mxu0 0.0
    %884 = vmatprep.subr.mxu0 0.0
    %885 = vmatpush1.msra.mxu0 0.0
    %886 = vmatprep.subr.mxu0 0.0
    %887 = vmatpush1.msra.mxu0 0.0
    %888 = vmatprep.subr.mxu0 0.0
    %889 = vmatpush1.msra.mxu0 0.0
    %890 = vmatprep.subr.mxu0 0.0
    %891 = vmatpush1.msra.mxu0 0.0
    %892 = vmatprep.subr.mxu0 0.0
    %893 = vmatpush1.msra.mxu0 0.0
    %894 = vmatprep.subr.mxu0 0.0
    %895 = vmatpush1.msra.mxu0 0.0
    %896 = vmatprep.subr.mxu0 0.0
    %897 = vmatpush1.msra.mxu0 0.0
    %898 = vmatprep.subr.mxu0 0.0
    %899 = vmatpush1.msra.mxu0 0.0
    %900 = vmatprep.subr.mxu0 0.0
    %901 = vmatpush1.msra.mxu0 0.0
    %902 = vmatprep.subr.mxu0 0.0
    %903 = vmatpush1.msra.mxu0 0.0
    %904 = vmatprep.subr.mxu0 0.0
    %905 = vmatpush1.msra.mxu0 0.0
    %906 = vmatprep.subr.mxu0 0.0
    %907 = vmatpush1.msra.mxu0 0.0
    %908 = vmatprep.subr.mxu0 0.0
    %909 = vmatpush1.msra.mxu0 0.0
    %910 = vmatprep.subr.mxu0 0.0
    %911 = vmatpush1.msra.mxu0 0.0
    %912 = vmatprep.subr.mxu0 0.0
    %913 = vmatpush1.msra.mxu0 0.0
    %914 = vmatprep.subr.mxu0 0.0
    %915 = vmatpush1.msra.mxu0 0.0
    %916 = vmatprep.subr.mxu0 0.0
    %917 = vmatpush1.msra.mxu0 0.0
    %918 = vmatprep.subr.mxu0 0.0
    %919 = vmatpush1.msra.mxu0 0.0
    %920 = vmatprep.subr.mxu0 0.0
    %921 = vmatpush1.msra.mxu0 0.0
    %922 = vmatprep.subr.mxu0 0.0
    %923 = vmatpush1.msra.mxu0 0.0
    %924 = vmatprep.subr.mxu0 0.0
    %925 = vmatpush1.msra.mxu0 0.0
    %926 = vmatprep.subr.mxu0 0.0
    %927 = vmatpush1.msra.mxu0 0.0
    %928 = vmatprep.subr.mxu0 0.0
    %929 = vmatpush1.msra.mxu0 0.0
    %930 = vmatprep.subr.mxu0 0.0
    %931 = vmatpush1.msra.mxu0 0.0
    %932 = vmatprep.subr.mxu0 0.0
    %933 = vmatpush1.msra.mxu0 0.0
    %934 = vmatprep.mubr.f32.mxu0 0.0
    %v935 = vand.u32 %v671, 4294901760
    %v936 = vsub.f32 %v671, %v935
    %937 = vmatmul.mubr.f32.gmra.mrb[0].mxu0 %v936
    %v938 = vpop.f32.mrb[0].mxu0
    %v939 = vadd.f32 %v853, %v938
    %v940 = vpop.f32.mrb[0].mxu0
    %941 = vmatprep.mubr.f32.mxu0 0.0
    %v942 = vand.u32 %v674, 4294901760
    %v943 = vsub.f32 %v674, %v942
    %944 = vmatmul.mubr.f32.gmra.mrb[0].mxu0 %v943
    %v945 = vpop.f32.mrb[0].mxu0
    %v946 = vadd.f32 %v859, %v945
    %v947 = vpop.f32.mrb[0].mxu0
    %948 = vdwg.mxu0
    %949 = vmatprep.subr.mxu0 0.0
    %v950 = vand.u32 %v659, 4294901760
    %951 = vmatpush1.msra.mxu0 %v950
    %952 = vmatprep.subr.mxu0 0.0
    %v953 = vand.u32 %v660, 4294901760
    %954 = vmatpush1.msra.mxu0 %v953
    %955 = vmatprep.subr.mxu0 0.0
    %v956 = vand.u32 %v661, 4294901760
    %957 = vmatpush1.msra.mxu0 %v956
    %958 = vmatprep.subr.mxu0 0.0
    %v959 = vand.u32 %v662, 4294901760
    %960 = vmatpush1.msra.mxu0 %v959
    %961 = vmatprep.subr.mxu0 0.0
    %962 = vmatpush1.msra.mxu0 0.0
    %963 = vmatprep.subr.mxu0 0.0
    %964 = vmatpush1.msra.mxu0 0.0
    %965 = vmatprep.subr.mxu0 0.0
    %966 = vmatpush1.msra.mxu0 0.0
    %967 = vmatprep.subr.mxu0 0.0
    %968 = vmatpush1.msra.mxu0 0.0
    %969 = vmatprep.subr.mxu0 0.0
    %970 = vmatpush1.msra.mxu0 0.0
    %971 = vmatprep.subr.mxu0 0.0
    %972 = vmatpush1.msra.mxu0 0.0
    %973 = vmatprep.subr.mxu0 0.0
    %974 = vmatpush1.msra.mxu0 0.0
    %975 = vmatprep.subr.mxu0 0.0
    %976 = vmatpush1.msra.mxu0 0.0
    %977 = vmatprep.subr.mxu0 0.0
    %978 = vmatpush1.msra.mxu0 0.0
    %979 = vmatprep.subr.mxu0 0.0
    %980 = vmatpush1.msra.mxu0 0.0
    %981 = vmatprep.subr.mxu0 0.0
    %982 = vmatpush1.msra.mxu0 0.0
    %983 = vmatprep.subr.mxu0 0.0
    %984 = vmatpush1.msra.mxu0 0.0
    %985 = vmatprep.subr.mxu0 0.0
    %986 = vmatpush1.msra.mxu0 0.0
    %987 = vmatprep.subr.mxu0 0.0
    %988 = vmatpush1.msra.mxu0 0.0
    %989 = vmatprep.subr.mxu0 0.0
    %990 = vmatpush1.msra.mxu0 0.0
    %991 = vmatprep.subr.mxu0 0.0
    %992 = vmatpush1.msra.mxu0 0.0
    %993 = vmatprep.subr.mxu0 0.0
    %994 = vmatpush1.msra.mxu0 0.0
    %995 = vmatprep.subr.mxu0 0.0
    %996 = vmatpush1.msra.mxu0 0.0
    %997 = vmatprep.subr.mxu0 0.0
    %998 = vmatpush1.msra.mxu0 0.0
    %999 = vmatprep.subr.mxu0 0.0
    %1000 = vmatpush1.msra.mxu0 0.0
    %1001 = vmatprep.subr.mxu0 0.0
    %1002 = vmatpush1.msra.mxu0 0.0
    %1003 = vmatprep.subr.mxu0 0.0
    %1004 = vmatpush1.msra.mxu0 0.0
    %1005 = vmatprep.subr.mxu0 0.0
    %1006 = vmatpush1.msra.mxu0 0.0
    %1007 = vmatprep.subr.mxu0 0.0
    %1008 = vmatpush1.msra.mxu0 0.0
    %1009 = vmatprep.subr.mxu0 0.0
    %1010 = vmatpush1.msra.mxu0 0.0
    %1011 = vmatprep.subr.mxu0 0.0
    %1012 = vmatpush1.msra.mxu0 0.0
    %1013 = vmatprep.subr.mxu0 0.0
    %1014 = vmatpush1.msra.mxu0 0.0
    %1015 = vmatprep.subr.mxu0 0.0
    %1016 = vmatpush1.msra.mxu0 0.0
    %1017 = vmatprep.mubr.f32.mxu0 0.0
    %v1018 = vand.u32 %v671, 4294901760
    %v1019 = vsub.f32 %v671, %v1018
    %v1020 = vand.u32 %v1019, 4294901760
    %1021 = vmatmul.mubr.f32.gmra.mrb[0].mxu0 %v1020
    %v1022 = vpop.f32.mrb[0].mxu0
    %v1023 = vadd.f32 %v939, %v1022
    %v1024 = vpop.f32.mrb[0].mxu0
    %1025 = vmatprep.mubr.f32.mxu0 0.0
    %v1026 = vand.u32 %v674, 4294901760
    %v1027 = vsub.f32 %v674, %v1026
    %v1028 = vand.u32 %v1027, 4294901760
    %1029 = vmatmul.mubr.f32.gmra.mrb[0].mxu0 %v1028
    %v1030 = vpop.f32.mrb[0].mxu0
    %v1031 = vadd.f32 %v946, %v1030
    %v1032 = vpop.f32.mrb[0].mxu0
    %1033 = vdwg.mxu0
    %1034 = vmatprep.subr.mxu0 0.0
    %v1035 = vand.u32 %v659, 4294901760
    %v1036 = vsub.f32 %v659, %v1035
    %v1037 = vand.u32 %v1036, 4294901760
    %1038 = vmatpush1.msra.mxu0 %v1037
    %1039 = vmatprep.subr.mxu0 0.0
    %v1040 = vand.u32 %v660, 4294901760
    %v1041 = vsub.f32 %v660, %v1040
    %v1042 = vand.u32 %v1041, 4294901760
    %1043 = vmatpush1.msra.mxu0 %v1042
    %1044 = vmatprep.subr.mxu0 0.0
    %v1045 = vand.u32 %v661, 4294901760
    %v1046 = vsub.f32 %v661, %v1045
    %v1047 = vand.u32 %v1046, 4294901760
    %1048 = vmatpush1.msra.mxu0 %v1047
    %1049 = vmatprep.subr.mxu0 0.0
    %v1050 = vand.u32 %v662, 4294901760
    %v1051 = vsub.f32 %v662, %v1050
    %v1052 = vand.u32 %v1051, 4294901760
    %1053 = vmatpush1.msra.mxu0 %v1052
    %1054 = vmatprep.subr.mxu0 0.0
    %1055 = vmatpush1.msra.mxu0 0.0
    %1056 = vmatprep.subr.mxu0 0.0
    %1057 = vmatpush1.msra.mxu0 0.0
    %1058 = vmatprep.subr.mxu0 0.0
    %1059 = vmatpush1.msra.mxu0 0.0
    %1060 = vmatprep.subr.mxu0 0.0
    %1061 = vmatpush1.msra.mxu0 0.0
    %1062 = vmatprep.subr.mxu0 0.0
    %1063 = vmatpush1.msra.mxu0 0.0
    %1064 = vmatprep.subr.mxu0 0.0
    %1065 = vmatpush1.msra.mxu0 0.0
    %1066 = vmatprep.subr.mxu0 0.0
    %1067 = vmatpush1.msra.mxu0 0.0
    %1068 = vmatprep.subr.mxu0 0.0
    %1069 = vmatpush1.msra.mxu0 0.0
    %1070 = vmatprep.subr.mxu0 0.0
    %1071 = vmatpush1.msra.mxu0 0.0
    %1072 = vmatprep.subr.mxu0 0.0
    %1073 = vmatpush1.msra.mxu0 0.0
    %1074 = vmatprep.subr.mxu0 0.0
    %1075 = vmatpush1.msra.mxu0 0.0
    %1076 = vmatprep.subr.mxu0 0.0
    %1077 = vmatpush1.msra.mxu0 0.0
    %1078 = vmatprep.subr.mxu0 0.0
    %1079 = vmatpush1.msra.mxu0 0.0
    %1080 = vmatprep.subr.mxu0 0.0
    %1081 = vmatpush1.msra.mxu0 0.0
    %1082 = vmatprep.subr.mxu0 0.0
    %1083 = vmatpush1.msra.mxu0 0.0
    %1084 = vmatprep.subr.mxu0 0.0
    %1085 = vmatpush1.msra.mxu0 0.0
    %1086 = vmatprep.subr.mxu0 0.0
    %1087 = vmatpush1.msra.mxu0 0.0
    %1088 = vmatprep.subr.mxu0 0.0
    %1089 = vmatpush1.msra.mxu0 0.0
    %1090 = vmatprep.subr.mxu0 0.0
    %1091 = vmatpush1.msra.mxu0 0.0
    %1092 = vmatprep.subr.mxu0 0.0
    %1093 = vmatpush1.msra.mxu0 0.0
    %1094 = vmatprep.subr.mxu0 0.0
    %1095 = vmatpush1.msra.mxu0 0.0
    %1096 = vmatprep.subr.mxu0 0.0
    %1097 = vmatpush1.msra.mxu0 0.0
    %1098 = vmatprep.subr.mxu0 0.0
    %1099 = vmatpush1.msra.mxu0 0.0
    %1100 = vmatprep.subr.mxu0 0.0
    %1101 = vmatpush1.msra.mxu0 0.0
    %1102 = vmatprep.subr.mxu0 0.0
    %1103 = vmatpush1.msra.mxu0 0.0
    %1104 = vmatprep.subr.mxu0 0.0
    %1105 = vmatpush1.msra.mxu0 0.0
    %1106 = vmatprep.subr.mxu0 0.0
    %1107 = vmatpush1.msra.mxu0 0.0
    %1108 = vmatprep.subr.mxu0 0.0
    %1109 = vmatpush1.msra.mxu0 0.0
    %1110 = vmatprep.mubr.f32.mxu0 0.0
    %v1111 = vand.u32 %v671, 4294901760
    %1112 = vmatmul.mubr.f32.gmra.mrb[0].mxu0 %v1111
    %v1113 = vpop.f32.mrb[0].mxu0
    %v1114 = vadd.f32 %v1023, %v1113
    %v1115 = vpop.f32.mrb[0].mxu0
    %1116 = vmatprep.mubr.f32.mxu0 0.0
    %v1117 = vand.u32 %v674, 4294901760
    %1118 = vmatmul.mubr.f32.gmra.mrb[0].mxu0 %v1117
    %v1119 = vpop.f32.mrb[0].mxu0
    %v1120 = vadd.f32 %v1031, %v1119
    %v1121 = vpop.f32.mrb[0].mxu0
    %1122 = vdwg.mxu0
    %1123 = vmatprep.subr.mxu0 0.0
    %v1124 = vand.u32 %v659, 4294901760
    %1125 = vmatpush1.msra.mxu0 %v1124
    %1126 = vmatprep.subr.mxu0 0.0
    %v1127 = vand.u32 %v660, 4294901760
    %1128 = vmatpush1.msra.mxu0 %v1127
    %1129 = vmatprep.subr.mxu0 0.0
    %v1130 = vand.u32 %v661, 4294901760
    %1131 = vmatpush1.msra.mxu0 %v1130
    %1132 = vmatprep.subr.mxu0 0.0
    %v1133 = vand.u32 %v662, 4294901760
    %1134 = vmatpush1.msra.mxu0 %v1133
    %1135 = vmatprep.subr.mxu0 0.0
    %1136 = vmatpush1.msra.mxu0 0.0
    %1137 = vmatprep.subr.mxu0 0.0
    %1138 = vmatpush1.msra.mxu0 0.0
    %1139 = vmatprep.subr.mxu0 0.0
    %1140 = vmatpush1.msra.mxu0 0.0
    %1141 = vmatprep.subr.mxu0 0.0
    %1142 = vmatpush1.msra.mxu0 0.0
    %1143 = vmatprep.subr.mxu0 0.0
    %1144 = vmatpush1.msra.mxu0 0.0
    %1145 = vmatprep.subr.mxu0 0.0
    %1146 = vmatpush1.msra.mxu0 0.0
    %1147 = vmatprep.subr.mxu0 0.0
    %1148 = vmatpush1.msra.mxu0 0.0
    %1149 = vmatprep.subr.mxu0 0.0
    %1150 = vmatpush1.msra.mxu0 0.0
    %1151 = vmatprep.subr.mxu0 0.0
    %1152 = vmatpush1.msra.mxu0 0.0
    %1153 = vmatprep.subr.mxu0 0.0
    %1154 = vmatpush1.msra.mxu0 0.0
    %1155 = vmatprep.subr.mxu0 0.0
    %1156 = vmatpush1.msra.mxu0 0.0
    %1157 = vmatprep.subr.mxu0 0.0
    %1158 = vmatpush1.msra.mxu0 0.0
    %1159 = vmatprep.subr.mxu0 0.0
    %1160 = vmatpush1.msra.mxu0 0.0
    %1161 = vmatprep.subr.mxu0 0.0
    %1162 = vmatpush1.msra.mxu0 0.0
    %1163 = vmatprep.subr.mxu0 0.0
    %1164 = vmatpush1.msra.mxu0 0.0
    %1165 = vmatprep.subr.mxu0 0.0
    %1166 = vmatpush1.msra.mxu0 0.0
    %1167 = vmatprep.subr.mxu0 0.0
    %1168 = vmatpush1.msra.mxu0 0.0
    %1169 = vmatprep.subr.mxu0 0.0
    %1170 = vmatpush1.msra.mxu0 0.0
    %1171 = vmatprep.subr.mxu0 0.0
    %1172 = vmatpush1.msra.mxu0 0.0
    %1173 = vmatprep.subr.mxu0 0.0
    %1174 = vmatpush1.msra.mxu0 0.0
    %1175 = vmatprep.subr.mxu0 0.0
    %1176 = vmatpush1.msra.mxu0 0.0
    %1177 = vmatprep.subr.mxu0 0.0
    %1178 = vmatpush1.msra.mxu0 0.0
    %1179 = vmatprep.subr.mxu0 0.0
    %1180 = vmatpush1.msra.mxu0 0.0
    %1181 = vmatprep.subr.mxu0 0.0
    %1182 = vmatpush1.msra.mxu0 0.0
    %1183 = vmatprep.subr.mxu0 0.0
    %1184 = vmatpush1.msra.mxu0 0.0
    %1185 = vmatprep.subr.mxu0 0.0
    %1186 = vmatpush1.msra.mxu0 0.0
    %1187 = vmatprep.subr.mxu0 0.0
    %1188 = vmatpush1.msra.mxu0 0.0
    %1189 = vmatprep.subr.mxu0 0.0
    %1190 = vmatpush1.msra.mxu0 0.0
    %1191 = vmatprep.mubr.f32.mxu0 0.0
    %v1192 = vand.u32 %v671, 4294901760
    %1193 = vmatmul.mubr.f32.gmra.mrb[0].mxu0 %v1192
    %v1194 = vpop.f32.mrb[0].mxu0
    %v1195 = vadd.f32 %v1114, %v1194
    %v1196 = vpop.f32.mrb[0].mxu0
    %1197 = vmatprep.mubr.f32.mxu0 0.0
    %v1198 = vand.u32 %v674, 4294901760
    %1199 = vmatmul.mubr.f32.gmra.mrb[0].mxu0 %v1198
    %v1200 = vpop.f32.mrb[0].mxu0
    %v1201 = vadd.f32 %v1120, %v1200
    %v1202 = vpop.f32.mrb[0].mxu0
    %1203 = vdwg.mxu0
    %1204 = vst.msk [vmem:[#allocation8] sm:$0xff] %vm106, %v1195
    %1205 = vst.msk [vmem:[#allocation8 + $0x8] sm:$0xff] %vm106, %v1201
    // Predicated region
    $region42: #{tpu_custom_call.1} parent=1 // pred_check
      _
    $region43: #{tpu_custom_call.1} parent=1 // pred_check_branch
      %1207 = sbr.rel (0) target = $region45
    $region44: #{tpu_custom_call.1} parent=1 // pred_region
      %s1209 = ssub.s32 256, 256
      %1210 = vsyncadd [#allocation4], %s1209
      %s1211 = sshll.u32 [#allocation8], 4
      %s1212 = int_to_ptr.vmem [resolvable:$true] %s1211
      %1217 = dma.vmem_to_hbm [thread:$0]  %s1212, 256, %s7, [#allocation4], 128, 128, 8
    $region45: #{tpu_custom_call.1} parent=1 // pred_fallthru
      _
    // Predicated region
    $region46: #{tpu_custom_call.1} parent=1 // pred_check
      _
    $region47: #{tpu_custom_call.1} parent=1 // pred_check_branch
      %1219 = sbr.rel (0) target = $region49
    $region48: #{tpu_custom_call.1} parent=1 // pred_region
      %1220 = dma.done [#allocation4], 256
    $region49: #{tpu_custom_call.1} parent=1 // pred_fallthru
      _
    %1221 = vsyncpa [#allocation3], 1
    %1222 = vsyncpa [#allocation6], 1
    %1223 = vsyncpa [#allocation4], 1

</llo_original>
